<compile_context>
chip_gen: v6e
topology: v6e:2x2x1
jax: 0.10.0
libtpu: 0.0.40
codegen_flags: <defaults>
</compile_context>

<pallas_src>
import functools
import math

import jax
import jax.numpy as jnp
import numpy as np
from jax import lax
from jax.experimental import pallas as pl
from jax.experimental.pallas import tpu as pltpu


def mha_kernel(*refs, heads_num, d_k, has_mask, return_attn):
    """One (batch, M-tile) grid step: projections, per-head SDPA, fused W_O."""
    it = iter(refs)
    q_ref = next(it)                       # (1, TM, D)  bf16
    k_ref = next(it)                       # (1, N,  D)  bf16
    v_ref = next(it)                       # (1, N,  D)  bf16
    mask_ref = next(it) if has_mask else None    # (1, TM, N) f32
    wq_ref, bq_ref = next(it), next(it)    # (D, D) bf16 pre-transposed, (1, D) f32
    wk_ref, bk_ref = next(it), next(it)
    wv_ref, bv_ref = next(it), next(it)
    wo_ref, bo_ref = next(it), next(it)
    out_ref = next(it)                     # (1, TM, D) f32
    attn_ref = next(it) if return_attn else None  # (1, H, TM, N) f32

    f32 = jnp.float32
    bf16 = jnp.bfloat16

    q = q_ref[0]          # (TM, D)
    k = k_ref[0]          # (N, D)
    v = v_ref[0]          # (N, D)

    # Projections: single K=D bf16 matmuls, weights already (in_features, out_features).
    qp = (jnp.dot(q, wq_ref[...], preferred_element_type=f32) + bq_ref[0]).astype(bf16)
    kp = (jnp.dot(k, wk_ref[...], preferred_element_type=f32) + bk_ref[0]).astype(bf16)
    vp = (jnp.dot(v, wv_ref[...], preferred_element_type=f32) + bv_ref[0]).astype(bf16)

    scale = jnp.float32(1.0 / math.sqrt(d_k))
    neg = jnp.float32(-1e9)
    # Contract the last axis of both operands: no transpose of K materialized.
    qk_dims = (((1,), (1,)), ((), ()))

    head_outs = []
    # Static loop over heads (heads_num is small; fully unrolled).
    for h in range(heads_num):
        lo = h * d_k
        qh = qp[:, lo:lo + d_k]            # (TM, d_k) bf16
        kh = kp[:, lo:lo + d_k]            # (N,  d_k) bf16
        vh = vp[:, lo:lo + d_k]            # (N,  d_k) bf16

        scores = lax.dot_general(qh, kh, qk_dims,
                                 preferred_element_type=f32) * scale  # (TM, N) f32
        if has_mask:
            scores = scores + mask_ref[0] * neg   # mask==1 -> effectively -inf

        # Numerically-stable softmax along keys (f32 stats, EUP reciprocal).
        m = jnp.max(scores, axis=-1, keepdims=True)
        e = jnp.exp(scores - m)
        s = jnp.sum(e, axis=-1, keepdims=True)
        w = e * pl.reciprocal(s, approx=True)     # (TM, N) f32

        if return_attn:
            attn_ref[0, h] = w

        head_outs.append(
            jnp.dot(w.astype(bf16), vh, preferred_element_type=f32).astype(bf16))

    # Fused output projection: one K=D matmul on the concatenated heads.
    z = jnp.concatenate(head_outs, axis=-1)       # (TM, D) bf16
    out_ref[0] = jnp.dot(z, wo_ref[...], preferred_element_type=f32) + bo_ref[0]


def multi_head_attention(queries, keys, values, params, *, heads_num,
                         mask=None, return_attn_weights=True, tm=None):
    """queries: (B, M, D); keys/values: (B, N, D). Returns (out, attn_weights)."""
    B, M, D = queries.shape
    _, N, _ = keys.shape
    d_k = D // heads_num
    has_mask = mask is not None

    wq, bq, wk, bk, wv, bv, wo, bo = params
    bf16 = jnp.bfloat16
    # Pre-transpose the nn.Linear weights ONCE (y = x @ W.T) and cast to bf16.
    wq_t = wq.T.astype(bf16)
    wk_t = wk.T.astype(bf16)
    wv_t = wv.T.astype(bf16)
    wo_t = wo.T.astype(bf16)
    q_b = queries.astype(bf16)
    k_b = keys.astype(bf16)
    v_b = values.astype(bf16)

    # M-tile size: keeps per-step VMEM bounded for long sequences (v7x: 64 MiB)
    # and gives more parallel grid points for megacore sharding.
    if tm is None:
        tm = min(M, 256)
    if M % tm != 0:
        tm = M
    num_m_tiles = M // tm

    kernel = functools.partial(mha_kernel, heads_num=heads_num, d_k=d_k,
                               has_mask=has_mask, return_attn=return_attn_weights)

    def rep_spec(shape):
        return pl.BlockSpec(shape, lambda b, m: (0,) * len(shape))

    in_specs = [
        pl.BlockSpec((1, tm, D), lambda b, m: (b, m, 0)),   # queries
        pl.BlockSpec((1, N, D), lambda b, m: (b, 0, 0)),    # keys
        pl.BlockSpec((1, N, D), lambda b, m: (b, 0, 0)),    # values
    ]
    inputs = [q_b, k_b, v_b]
    if has_mask:
        in_specs.append(pl.BlockSpec((1, tm, N), lambda b, m: (b, m, 0)))
        inputs.append(mask.astype(jnp.float32))
    in_specs += [
        rep_spec((D, D)), rep_spec((1, D)),    # W_Q^T, b_Q
        rep_spec((D, D)), rep_spec((1, D)),    # W_K^T, b_K
        rep_spec((D, D)), rep_spec((1, D)),    # W_V^T, b_V
        rep_spec((D, D)), rep_spec((1, D)),    # W_O^T, b_O
    ]
    inputs += [wq_t, bq, wk_t, bk, wv_t, bv, wo_t, bo]

    out_shape = [jax.ShapeDtypeStruct((B, M, D), jnp.float32)]
    out_specs = [pl.BlockSpec((1, tm, D), lambda b, m: (b, m, 0))]
    if return_attn_weights:
        out_shape.append(jax.ShapeDtypeStruct((B, heads_num, M, N), jnp.float32))
        out_specs.append(
            pl.BlockSpec((1, heads_num, tm, N), lambda b, m: (b, 0, m, 0)))

    results = pl.pallas_call(
        kernel,
        out_shape=tuple(out_shape),
        grid_spec=pltpu.PrefetchScalarGridSpec(
            num_scalar_prefetch=0,
            grid=(B, num_m_tiles),
            in_specs=in_specs,
            out_specs=out_specs,
        ),
        compiler_params=pltpu.CompilerParams(
            dimension_semantics=("parallel", "parallel"),
            vmem_limit_bytes=48 * 1024 * 1024,
        ),
    )(*inputs)

    if return_attn_weights:
        out, attn = results
        return out, attn
    (out,) = results
    return out, None


def init_params(key, d_model, attention_bias=True):
    """Deterministic xavier_uniform weights + normal(std=1e-6) biases."""
    ks = jax.random.split(key, 8)
    bound = math.sqrt(6.0 / (d_model + d_model))

    def xavier(k):
        return jax.random.uniform(k, (d_model, d_model), jnp.float32, -bound, bound)

    def bias(k):
        if attention_bias:
            return jax.random.normal(k, (1, d_model), jnp.float32) * 1e-6
        return jnp.zeros((1, d_model), jnp.float32)

    wq, wk, wv, wo = xavier(ks[0]), xavier(ks[1]), xavier(ks[2]), xavier(ks[3])
    bq, bk, bv, bo = bias(ks[4]), bias(ks[5]), bias(ks[6]), bias(ks[7])
    return (wq, bq, wk, bk, wv, bv, wo, bo)


def reference_mha(queries, keys, values, params, heads_num, mask=None):
    """Pure-JAX f32 reference mirroring the PyTorch module."""
    wq, bq, wk, bk, wv, bv, wo, bo = params
    B, M, D = queries.shape
    N = keys.shape[1]
    d_k = D // heads_num

    qp = queries @ wq.T + bq[0]
    kp = keys @ wk.T + bk[0]
    vp = values @ wv.T + bv[0]

    def split(x, L):
        return x.reshape(B, L, heads_num, d_k).transpose(0, 2, 1, 3)

    qh, kh, vh = split(qp, M), split(kp, N), split(vp, N)
    scores = jnp.einsum("bhmd,bhnd->bhmn", qh, kh) / math.sqrt(d_k)
    if mask is not None:
        scores = scores + mask[:, None, :, :] * (-1e9)
    w = jax.nn.softmax(scores, axis=-1)
    attn = jnp.einsum("bhmn,bhnd->bhmd", w, vh)
    z = attn.transpose(0, 2, 1, 3).reshape(B, M, D)
    out = z @ wo.T + bo[0]
    return out, w


if __name__ == "__main__":
    B, M, N, d_model, heads_num = 2, 8, 8, 32, 4

    key = jax.random.PRNGKey(0)
    kq, kk, kv, kp = jax.random.split(key, 4)
    queries = jax.random.normal(kq, (B, M, d_model), jnp.float32)
    keys_ = jax.random.normal(kk, (B, N, d_model), jnp.float32)
    values = jax.random.normal(kv, (B, N, d_model), jnp.float32)
    params = init_params(kp, d_model, attention_bias=True)

    # bf16 matmuls -> loosened tolerances vs. f32 reference.
    RTOL, ATOL = 5e-2, 5e-2

    # Case 1: no mask (no zero mask is synthesized or DMA'd).
    out, attn_w = multi_head_attention(queries, keys_, values, params,
                                       heads_num=heads_num, mask=None)
    jax.block_until_ready((out, attn_w))
    ref_out, ref_w = reference_mha(queries, keys_, values, params, heads_num)
    assert out.shape == (B, M, d_model)
    assert attn_w.shape == (B, heads_num, M, N)
    np.testing.assert_allclose(np.asarray(out), np.asarray(ref_out),
                               rtol=RTOL, atol=ATOL)
    np.testing.assert_allclose(np.asarray(attn_w), np.asarray(ref_w),
                               rtol=RTOL, atol=ATOL)

    # Case 2: causal mask (ones above the diagonal are masked out).
    causal = jnp.triu(jnp.ones((M, N), jnp.float32), k=1)
    mask = jnp.tile(causal[None], (B, 1, 1))
    out_m, attn_m = multi_head_attention(queries, keys_, values, params,
                                         heads_num=heads_num, mask=mask)
    jax.block_until_ready((out_m, attn_m))
    ref_out_m, ref_w_m = reference_mha(queries, keys_, values, params,
                                       heads_num, mask=mask)
    np.testing.assert_allclose(np.asarray(out_m), np.asarray(ref_out_m),
                               rtol=RTOL, atol=ATOL)
    np.testing.assert_allclose(np.asarray(attn_m), np.asarray(ref_w_m),
                               rtol=RTOL, atol=ATOL)

    # Case 3: output-only path (attention-weights HBM write skipped entirely).
    out_only, none_attn = multi_head_attention(queries, keys_, values, params,
                                               heads_num=heads_num, mask=None,
                                               return_attn_weights=False)
    jax.block_until_ready(out_only)
    assert none_attn is None
    np.testing.assert_allclose(np.asarray(out_only), np.asarray(ref_out),
                               rtol=RTOL, atol=ATOL)

    print("KERNEL_OK")
</pallas_src>

<mosaic_0001>
module attributes {stable_mosaic.version = 11 : i64} {
  func.func @mha_kernel(%arg0: i32, %arg1: i32, %arg2: memref<1x8x32xbf16, #tpu.memory_space<vmem>>, %arg3: memref<1x8x32xbf16, #tpu.memory_space<vmem>>, %arg4: memref<1x8x32xbf16, #tpu.memory_space<vmem>>, %arg5: memref<32x32xbf16, #tpu.memory_space<vmem>>, %arg6: memref<1x32xf32, #tpu.memory_space<vmem>>, %arg7: memref<32x32xbf16, #tpu.memory_space<vmem>>, %arg8: memref<1x32xf32, #tpu.memory_space<vmem>>, %arg9: memref<32x32xbf16, #tpu.memory_space<vmem>>, %arg10: memref<1x32xf32, #tpu.memory_space<vmem>>, %arg11: memref<32x32xbf16, #tpu.memory_space<vmem>>, %arg12: memref<1x32xf32, #tpu.memory_space<vmem>>, %arg13: memref<1x8x32xf32, #tpu.memory_space<vmem>>, %arg14: memref<1x4x8x8xf32, #tpu.memory_space<vmem>>) attributes {dimension_semantics = [#tpu.dimension_semantics<parallel>, #tpu.dimension_semantics<parallel>], iteration_bounds = array<i64: 2, 1>, scalar_prefetch = 0 : i64, scratch_operands = 0 : i64, tpu.core_type = #tpu.core_type<tc>, window_params = [{transform_indices = @transform_0, window_bounds = array<i64: 1, 8, 32>}, {transform_indices = @transform_1, window_bounds = array<i64: 1, 8, 32>}, {transform_indices = @transform_2, window_bounds = array<i64: 1, 8, 32>}, {pipeline_mode = #tpu.pipeline_mode<synchronous>, transform_indices = @transform_3, window_bounds = array<i64: 32, 32>}, {pipeline_mode = #tpu.pipeline_mode<synchronous>, transform_indices = @transform_4, window_bounds = array<i64: 1, 32>}, {pipeline_mode = #tpu.pipeline_mode<synchronous>, transform_indices = @transform_5, window_bounds = array<i64: 32, 32>}, {pipeline_mode = #tpu.pipeline_mode<synchronous>, transform_indices = @transform_6, window_bounds = array<i64: 1, 32>}, {pipeline_mode = #tpu.pipeline_mode<synchronous>, transform_indices = @transform_7, window_bounds = array<i64: 32, 32>}, {pipeline_mode = #tpu.pipeline_mode<synchronous>, transform_indices = @transform_8, window_bounds = array<i64: 1, 32>}, {pipeline_mode = #tpu.pipeline_mode<synchronous>, transform_indices = @transform_9, window_bounds = array<i64: 32, 32>}, {pipeline_mode = #tpu.pipeline_mode<synchronous>, transform_indices = @transform_10, window_bounds = array<i64: 1, 32>}, {transform_indices = @transform_11, window_bounds = array<i64: 1, 8, 32>}, {transform_indices = @transform_12, window_bounds = array<i64: 1, 4, 8, 8>}]} {
    %c0 = arith.constant 0 : index
    %c0_0 = arith.constant 0 : index
    %c0_1 = arith.constant 0 : index
    %0 = vector.load %arg2[%c0, %c0_0, %c0_1] : memref<1x8x32xbf16, #tpu.memory_space<vmem>>, vector<1x8x32xbf16>
    %1 = vector.shape_cast %0 : vector<1x8x32xbf16> to vector<8x32xbf16>
    %c0_2 = arith.constant 0 : index
    %c0_3 = arith.constant 0 : index
    %c0_4 = arith.constant 0 : index
    %2 = vector.load %arg3[%c0_2, %c0_3, %c0_4] : memref<1x8x32xbf16, #tpu.memory_space<vmem>>, vector<1x8x32xbf16>
    %3 = vector.shape_cast %2 : vector<1x8x32xbf16> to vector<8x32xbf16>
    %c0_5 = arith.constant 0 : index
    %c0_6 = arith.constant 0 : index
    %c0_7 = arith.constant 0 : index
    %4 = vector.load %arg4[%c0_5, %c0_6, %c0_7] : memref<1x8x32xbf16, #tpu.memory_space<vmem>>, vector<1x8x32xbf16>
    %5 = vector.shape_cast %4 : vector<1x8x32xbf16> to vector<8x32xbf16>
    %c0_8 = arith.constant 0 : index
    %c0_9 = arith.constant 0 : index
    %6 = vector.load %arg5[%c0_8, %c0_9] : memref<32x32xbf16, #tpu.memory_space<vmem>>, vector<32x32xbf16>
    %cst = arith.constant dense<0.000000e+00> : vector<8x32xf32>
    %7 = tpu.matmul %1, %6, %cst {dimension_numbers = #tpu.dot_dimension_numbers<[1], [0], [0], [1], [0, 0, 1, 1], [], []>} : vector<8x32xbf16>, vector<32x32xbf16>, vector<8x32xf32> -> vector<8x32xf32>
    %c0_10 = arith.constant 0 : index
    %c0_11 = arith.constant 0 : index
    %8 = vector.load %arg6[%c0_10, %c0_11] : memref<1x32xf32, #tpu.memory_space<vmem>>, vector<1x32xf32>
    %9 = vector.shape_cast %8 : vector<1x32xf32> to vector<32xf32>
    %10 = vector.shape_cast %9 : vector<32xf32> to vector<1x32xf32>
    %11 = vector.broadcast %10 : vector<1x32xf32> to vector<8x32xf32>
    %12 = arith.addf %7, %11 : vector<8x32xf32>
    %13 = arith.truncf %12 : vector<8x32xf32> to vector<8x32xbf16>
    %c0_12 = arith.constant 0 : index
    %c0_13 = arith.constant 0 : index
    %14 = vector.load %arg7[%c0_12, %c0_13] : memref<32x32xbf16, #tpu.memory_space<vmem>>, vector<32x32xbf16>
    %cst_14 = arith.constant dense<0.000000e+00> : vector<8x32xf32>
    %15 = tpu.matmul %3, %14, %cst_14 {dimension_numbers = #tpu.dot_dimension_numbers<[1], [0], [0], [1], [0, 0, 1, 1], [], []>} : vector<8x32xbf16>, vector<32x32xbf16>, vector<8x32xf32> -> vector<8x32xf32>
    %c0_15 = arith.constant 0 : index
    %c0_16 = arith.constant 0 : index
    %16 = vector.load %arg8[%c0_15, %c0_16] : memref<1x32xf32, #tpu.memory_space<vmem>>, vector<1x32xf32>
    %17 = vector.shape_cast %16 : vector<1x32xf32> to vector<32xf32>
    %18 = vector.shape_cast %17 : vector<32xf32> to vector<1x32xf32>
    %19 = vector.broadcast %18 : vector<1x32xf32> to vector<8x32xf32>
    %20 = arith.addf %15, %19 : vector<8x32xf32>
    %21 = arith.truncf %20 : vector<8x32xf32> to vector<8x32xbf16>
    %c0_17 = arith.constant 0 : index
    %c0_18 = arith.constant 0 : index
    %22 = vector.load %arg9[%c0_17, %c0_18] : memref<32x32xbf16, #tpu.memory_space<vmem>>, vector<32x32xbf16>
    %cst_19 = arith.constant dense<0.000000e+00> : vector<8x32xf32>
    %23 = tpu.matmul %5, %22, %cst_19 {dimension_numbers = #tpu.dot_dimension_numbers<[1], [0], [0], [1], [0, 0, 1, 1], [], []>} : vector<8x32xbf16>, vector<32x32xbf16>, vector<8x32xf32> -> vector<8x32xf32>
    %c0_20 = arith.constant 0 : index
    %c0_21 = arith.constant 0 : index
    %24 = vector.load %arg10[%c0_20, %c0_21] : memref<1x32xf32, #tpu.memory_space<vmem>>, vector<1x32xf32>
    %25 = vector.shape_cast %24 : vector<1x32xf32> to vector<32xf32>
    %26 = vector.shape_cast %25 : vector<32xf32> to vector<1x32xf32>
    %27 = vector.broadcast %26 : vector<1x32xf32> to vector<8x32xf32>
    %28 = arith.addf %23, %27 : vector<8x32xf32>
    %29 = arith.truncf %28 : vector<8x32xf32> to vector<8x32xbf16>
    %30 = vector.extract_strided_slice %13 {offsets = [0, 0], sizes = [8, 8], strides = [1, 1]} : vector<8x32xbf16> to vector<8x8xbf16>
    %31 = vector.extract_strided_slice %21 {offsets = [0, 0], sizes = [8, 8], strides = [1, 1]} : vector<8x32xbf16> to vector<8x8xbf16>
    %32 = vector.extract_strided_slice %29 {offsets = [0, 0], sizes = [8, 8], strides = [1, 1]} : vector<8x32xbf16> to vector<8x8xbf16>
    %cst_22 = arith.constant dense<0.000000e+00> : vector<8x8xf32>
    %33 = tpu.matmul %30, %31, %cst_22 {dimension_numbers = #tpu.dot_dimension_numbers<[1], [1], [0], [0], [0, 0, 1, 0], [], []>} : vector<8x8xbf16>, vector<8x8xbf16>, vector<8x8xf32> -> vector<8x8xf32>
    %cst_23 = arith.constant 0.353553385 : f32
    %34 = vector.broadcast %cst_23 : f32 to vector<8x8xf32>
    %35 = arith.mulf %33, %34 : vector<8x8xf32>
    %cst_24 = arith.constant dense<0xFF800000> : vector<8xf32>
    %36 = vector.multi_reduction <maximumf>, %35, %cst_24 [1] : vector<8x8xf32> to vector<8xf32>
    %37 = vector.shape_cast %36 : vector<8xf32> to vector<8x1xf32>
    %38 = vector.broadcast %37 : vector<8x1xf32> to vector<8x8xf32>
    %39 = arith.subf %35, %38 : vector<8x8xf32>
    %40 = math.exp %39 : vector<8x8xf32>
    %cst_25 = arith.constant dense<0.000000e+00> : vector<8xf32>
    %41 = vector.multi_reduction <add>, %40, %cst_25 [1] : vector<8x8xf32> to vector<8xf32>
    %42 = vector.shape_cast %41 : vector<8xf32> to vector<8x1xf32>
    %43 = tpu.reciprocal %42 {approx = true} : vector<8x1xf32> -> vector<8x1xf32>
    %44 = vector.broadcast %43 : vector<8x1xf32> to vector<8x8xf32>
    %45 = arith.mulf %40, %44 : vector<8x8xf32>
    %c0_26 = arith.constant 0 : index
    %c0_27 = arith.constant 0 : index
    %c0_28 = arith.constant 0 : index
    %c0_29 = arith.constant 0 : index
    %46 = vector.load %arg14[%c0_26, %c0_27, %c0_28, %c0_29] : memref<1x4x8x8xf32, #tpu.memory_space<vmem>>, vector<1x1x8x8xf32>
    %47 = vector.shape_cast %46 : vector<1x1x8x8xf32> to vector<8x8xf32>
    %48 = vector.shape_cast %45 : vector<8x8xf32> to vector<1x1x8x8xf32>
    tpu.vector_store %arg14[%c0_26, %c0_27, %c0_28, %c0_29], %48 {strides = array<i32>} : memref<1x4x8x8xf32, #tpu.memory_space<vmem>>, vector<1x1x8x8xf32>,
    %49 = arith.truncf %45 : vector<8x8xf32> to vector<8x8xbf16>
    %cst_30 = arith.constant dense<0.000000e+00> : vector<8x8xf32>
    %50 = tpu.matmul %49, %32, %cst_30 {dimension_numbers = #tpu.dot_dimension_numbers<[1], [0], [0], [1], [0, 0, 1, 1], [], []>} : vector<8x8xbf16>, vector<8x8xbf16>, vector<8x8xf32> -> vector<8x8xf32>
    %51 = arith.truncf %50 : vector<8x8xf32> to vector<8x8xbf16>
    %52 = vector.extract_strided_slice %13 {offsets = [0, 8], sizes = [8, 8], strides = [1, 1]} : vector<8x32xbf16> to vector<8x8xbf16>
    %53 = vector.extract_strided_slice %21 {offsets = [0, 8], sizes = [8, 8], strides = [1, 1]} : vector<8x32xbf16> to vector<8x8xbf16>
    %54 = vector.extract_strided_slice %29 {offsets = [0, 8], sizes = [8, 8], strides = [1, 1]} : vector<8x32xbf16> to vector<8x8xbf16>
    %cst_31 = arith.constant dense<0.000000e+00> : vector<8x8xf32>
    %55 = tpu.matmul %52, %53, %cst_31 {dimension_numbers = #tpu.dot_dimension_numbers<[1], [1], [0], [0], [0, 0, 1, 0], [], []>} : vector<8x8xbf16>, vector<8x8xbf16>, vector<8x8xf32> -> vector<8x8xf32>
    %cst_32 = arith.constant 0.353553385 : f32
    %56 = vector.broadcast %cst_32 : f32 to vector<8x8xf32>
    %57 = arith.mulf %55, %56 : vector<8x8xf32>
    %cst_33 = arith.constant dense<0xFF800000> : vector<8xf32>
    %58 = vector.multi_reduction <maximumf>, %57, %cst_33 [1] : vector<8x8xf32> to vector<8xf32>
    %59 = vector.shape_cast %58 : vector<8xf32> to vector<8x1xf32>
    %60 = vector.broadcast %59 : vector<8x1xf32> to vector<8x8xf32>
    %61 = arith.subf %57, %60 : vector<8x8xf32>
    %62 = math.exp %61 : vector<8x8xf32>
    %cst_34 = arith.constant dense<0.000000e+00> : vector<8xf32>
    %63 = vector.multi_reduction <add>, %62, %cst_34 [1] : vector<8x8xf32> to vector<8xf32>
    %64 = vector.shape_cast %63 : vector<8xf32> to vector<8x1xf32>
    %65 = tpu.reciprocal %64 {approx = true} : vector<8x1xf32> -> vector<8x1xf32>
    %66 = vector.broadcast %65 : vector<8x1xf32> to vector<8x8xf32>
    %67 = arith.mulf %62, %66 : vector<8x8xf32>
    %c0_35 = arith.constant 0 : index
    %c1 = arith.constant 1 : index
    %c0_36 = arith.constant 0 : index
    %c0_37 = arith.constant 0 : index
    %68 = vector.load %arg14[%c0_35, %c1, %c0_36, %c0_37] : memref<1x4x8x8xf32, #tpu.memory_space<vmem>>, vector<1x1x8x8xf32>
    %69 = vector.shape_cast %68 : vector<1x1x8x8xf32> to vector<8x8xf32>
    %70 = vector.shape_cast %67 : vector<8x8xf32> to vector<1x1x8x8xf32>
    tpu.vector_store %arg14[%c0_35, %c1, %c0_36, %c0_37], %70 {strides = array<i32>} : memref<1x4x8x8xf32, #tpu.memory_space<vmem>>, vector<1x1x8x8xf32>,
    %71 = arith.truncf %67 : vector<8x8xf32> to vector<8x8xbf16>
    %cst_38 = arith.constant dense<0.000000e+00> : vector<8x8xf32>
    %72 = tpu.matmul %71, %54, %cst_38 {dimension_numbers = #tpu.dot_dimension_numbers<[1], [0], [0], [1], [0, 0, 1, 1], [], []>} : vector<8x8xbf16>, vector<8x8xbf16>, vector<8x8xf32> -> vector<8x8xf32>
    %73 = arith.truncf %72 : vector<8x8xf32> to vector<8x8xbf16>
    %74 = vector.extract_strided_slice %13 {offsets = [0, 16], sizes = [8, 8], strides = [1, 1]} : vector<8x32xbf16> to vector<8x8xbf16>
    %75 = vector.extract_strided_slice %21 {offsets = [0, 16], sizes = [8, 8], strides = [1, 1]} : vector<8x32xbf16> to vector<8x8xbf16>
    %76 = vector.extract_strided_slice %29 {offsets = [0, 16], sizes = [8, 8], strides = [1, 1]} : vector<8x32xbf16> to vector<8x8xbf16>
    %cst_39 = arith.constant dense<0.000000e+00> : vector<8x8xf32>
    %77 = tpu.matmul %74, %75, %cst_39 {dimension_numbers = #tpu.dot_dimension_numbers<[1], [1], [0], [0], [0, 0, 1, 0], [], []>} : vector<8x8xbf16>, vector<8x8xbf16>, vector<8x8xf32> -> vector<8x8xf32>
    %cst_40 = arith.constant 0.353553385 : f32
    %78 = vector.broadcast %cst_40 : f32 to vector<8x8xf32>
    %79 = arith.mulf %77, %78 : vector<8x8xf32>
    %cst_41 = arith.constant dense<0xFF800000> : vector<8xf32>
    %80 = vector.multi_reduction <maximumf>, %79, %cst_41 [1] : vector<8x8xf32> to vector<8xf32>
    %81 = vector.shape_cast %80 : vector<8xf32> to vector<8x1xf32>
    %82 = vector.broadcast %81 : vector<8x1xf32> to vector<8x8xf32>
    %83 = arith.subf %79, %82 : vector<8x8xf32>
    %84 = math.exp %83 : vector<8x8xf32>
    %cst_42 = arith.constant dense<0.000000e+00> : vector<8xf32>
    %85 = vector.multi_reduction <add>, %84, %cst_42 [1] : vector<8x8xf32> to vector<8xf32>
    %86 = vector.shape_cast %85 : vector<8xf32> to vector<8x1xf32>
    %87 = tpu.reciprocal %86 {approx = true} : vector<8x1xf32> -> vector<8x1xf32>
    %88 = vector.broadcast %87 : vector<8x1xf32> to vector<8x8xf32>
    %89 = arith.mulf %84, %88 : vector<8x8xf32>
    %c0_43 = arith.constant 0 : index
    %c2 = arith.constant 2 : index
    %c0_44 = arith.constant 0 : index
    %c0_45 = arith.constant 0 : index
    %90 = vector.load %arg14[%c0_43, %c2, %c0_44, %c0_45] : memref<1x4x8x8xf32, #tpu.memory_space<vmem>>, vector<1x1x8x8xf32>
    %91 = vector.shape_cast %90 : vector<1x1x8x8xf32> to vector<8x8xf32>
    %92 = vector.shape_cast %89 : vector<8x8xf32> to vector<1x1x8x8xf32>
    tpu.vector_store %arg14[%c0_43, %c2, %c0_44, %c0_45], %92 {strides = array<i32>} : memref<1x4x8x8xf32, #tpu.memory_space<vmem>>, vector<1x1x8x8xf32>,
    %93 = arith.truncf %89 : vector<8x8xf32> to vector<8x8xbf16>
    %cst_46 = arith.constant dense<0.000000e+00> : vector<8x8xf32>
    %94 = tpu.matmul %93, %76, %cst_46 {dimension_numbers = #tpu.dot_dimension_numbers<[1], [0], [0], [1], [0, 0, 1, 1], [], []>} : vector<8x8xbf16>, vector<8x8xbf16>, vector<8x8xf32> -> vector<8x8xf32>
    %95 = arith.truncf %94 : vector<8x8xf32> to vector<8x8xbf16>
    %96 = vector.extract_strided_slice %13 {offsets = [0, 24], sizes = [8, 8], strides = [1, 1]} : vector<8x32xbf16> to vector<8x8xbf16>
    %97 = vector.extract_strided_slice %21 {offsets = [0, 24], sizes = [8, 8], strides = [1, 1]} : vector<8x32xbf16> to vector<8x8xbf16>
    %98 = vector.extract_strided_slice %29 {offsets = [0, 24], sizes = [8, 8], strides = [1, 1]} : vector<8x32xbf16> to vector<8x8xbf16>
    %cst_47 = arith.constant dense<0.000000e+00> : vector<8x8xf32>
    %99 = tpu.matmul %96, %97, %cst_47 {dimension_numbers = #tpu.dot_dimension_numbers<[1], [1], [0], [0], [0, 0, 1, 0], [], []>} : vector<8x8xbf16>, vector<8x8xbf16>, vector<8x8xf32> -> vector<8x8xf32>
    %cst_48 = arith.constant 0.353553385 : f32
    %100 = vector.broadcast %cst_48 : f32 to vector<8x8xf32>
    %101 = arith.mulf %99, %100 : vector<8x8xf32>
    %cst_49 = arith.constant dense<0xFF800000> : vector<8xf32>
    %102 = vector.multi_reduction <maximumf>, %101, %cst_49 [1] : vector<8x8xf32> to vector<8xf32>
    %103 = vector.shape_cast %102 : vector<8xf32> to vector<8x1xf32>
    %104 = vector.broadcast %103 : vector<8x1xf32> to vector<8x8xf32>
    %105 = arith.subf %101, %104 : vector<8x8xf32>
    %106 = math.exp %105 : vector<8x8xf32>
    %cst_50 = arith.constant dense<0.000000e+00> : vector<8xf32>
    %107 = vector.multi_reduction <add>, %106, %cst_50 [1] : vector<8x8xf32> to vector<8xf32>
    %108 = vector.shape_cast %107 : vector<8xf32> to vector<8x1xf32>
    %109 = tpu.reciprocal %108 {approx = true} : vector<8x1xf32> -> vector<8x1xf32>
    %110 = vector.broadcast %109 : vector<8x1xf32> to vector<8x8xf32>
    %111 = arith.mulf %106, %110 : vector<8x8xf32>
    %c0_51 = arith.constant 0 : index
    %c3 = arith.constant 3 : index
    %c0_52 = arith.constant 0 : index
    %c0_53 = arith.constant 0 : index
    %112 = vector.load %arg14[%c0_51, %c3, %c0_52, %c0_53] : memref<1x4x8x8xf32, #tpu.memory_space<vmem>>, vector<1x1x8x8xf32>
    %113 = vector.shape_cast %112 : vector<1x1x8x8xf32> to vector<8x8xf32>
    %114 = vector.shape_cast %111 : vector<8x8xf32> to vector<1x1x8x8xf32>
    tpu.vector_store %arg14[%c0_51, %c3, %c0_52, %c0_53], %114 {strides = array<i32>} : memref<1x4x8x8xf32, #tpu.memory_space<vmem>>, vector<1x1x8x8xf32>,
    %115 = arith.truncf %111 : vector<8x8xf32> to vector<8x8xbf16>
    %cst_54 = arith.constant dense<0.000000e+00> : vector<8x8xf32>
    %116 = tpu.matmul %115, %98, %cst_54 {dimension_numbers = #tpu.dot_dimension_numbers<[1], [0], [0], [1], [0, 0, 1, 1], [], []>} : vector<8x8xbf16>, vector<8x8xbf16>, vector<8x8xf32> -> vector<8x8xf32>
    %117 = arith.truncf %116 : vector<8x8xf32> to vector<8x8xbf16>
    %118 = tpu.concatenate %51, %73, %95, %117 in 1 : vector<8x8xbf16>, vector<8x8xbf16>, vector<8x8xbf16>, vector<8x8xbf16> -> vector<8x32xbf16>
    %c0_55 = arith.constant 0 : index
    %c0_56 = arith.constant 0 : index
    %119 = vector.load %arg11[%c0_55, %c0_56] : memref<32x32xbf16, #tpu.memory_space<vmem>>, vector<32x32xbf16>
    %cst_57 = arith.constant dense<0.000000e+00> : vector<8x32xf32>
    %120 = tpu.matmul %118, %119, %cst_57 {dimension_numbers = #tpu.dot_dimension_numbers<[1], [0], [0], [1], [0, 0, 1, 1], [], []>} : vector<8x32xbf16>, vector<32x32xbf16>, vector<8x32xf32> -> vector<8x32xf32>
    %c0_58 = arith.constant 0 : index
    %c0_59 = arith.constant 0 : index
    %121 = vector.load %arg12[%c0_58, %c0_59] : memref<1x32xf32, #tpu.memory_space<vmem>>, vector<1x32xf32>
    %122 = vector.shape_cast %121 : vector<1x32xf32> to vector<32xf32>
    %123 = vector.shape_cast %122 : vector<32xf32> to vector<1x32xf32>
    %124 = vector.broadcast %123 : vector<1x32xf32> to vector<8x32xf32>
    %125 = arith.addf %120, %124 : vector<8x32xf32>
    %c0_60 = arith.constant 0 : index
    %c0_61 = arith.constant 0 : index
    %c0_62 = arith.constant 0 : index
    %126 = vector.load %arg13[%c0_60, %c0_61, %c0_62] : memref<1x8x32xf32, #tpu.memory_space<vmem>>, vector<1x8x32xf32>
    %127 = vector.shape_cast %126 : vector<1x8x32xf32> to vector<8x32xf32>
    %128 = vector.shape_cast %125 : vector<8x32xf32> to vector<1x8x32xf32>
    tpu.vector_store %arg13[%c0_60, %c0_61, %c0_62], %128 {strides = array<i32>} : memref<1x8x32xf32, #tpu.memory_space<vmem>>, vector<1x8x32xf32>,
    return
  }
  func.func @transform_0(%arg0: i32, %arg1: i32) -> (i32, i32, i32) {
    %c0_i32 = arith.constant 0 : i32
    %c0_i32_0 = arith.constant 0 : i32
    return %arg0, %arg1, %c0_i32 : i32, i32, i32
  }
  func.func @transform_1(%arg0: i32, %arg1: i32) -> (i32, i32, i32) {
    %c0_i32 = arith.constant 0 : i32
    %c0_i32_0 = arith.constant 0 : i32
    %c0_i32_1 = arith.constant 0 : i32
    return %arg0, %c0_i32, %c0_i32_0 : i32, i32, i32
  }
  func.func @transform_2(%arg0: i32, %arg1: i32) -> (i32, i32, i32) {
    %c0_i32 = arith.constant 0 : i32
    %c0_i32_0 = arith.constant 0 : i32
    %c0_i32_1 = arith.constant 0 : i32
    return %arg0, %c0_i32, %c0_i32_0 : i32, i32, i32
  }
  func.func @transform_3(%arg0: i32, %arg1: i32) -> (i32, i32) {
    %c0_i32 = arith.constant 0 : i32
    %c0_i32_0 = arith.constant 0 : i32
    %c0_i32_1 = arith.constant 0 : i32
    return %c0_i32, %c0_i32_0 : i32, i32
  }
  func.func @transform_4(%arg0: i32, %arg1: i32) -> (i32, i32) {
    %c0_i32 = arith.constant 0 : i32
    %c0_i32_0 = arith.constant 0 : i32
    %c0_i32_1 = arith.constant 0 : i32
    return %c0_i32, %c0_i32_0 : i32, i32
  }
  func.func @transform_5(%arg0: i32, %arg1: i32) -> (i32, i32) {
    %c0_i32 = arith.constant 0 : i32
    %c0_i32_0 = arith.constant 0 : i32
    %c0_i32_1 = arith.constant 0 : i32
    return %c0_i32, %c0_i32_0 : i32, i32
  }
  func.func @transform_6(%arg0: i32, %arg1: i32) -> (i32, i32) {
    %c0_i32 = arith.constant 0 : i32
    %c0_i32_0 = arith.constant 0 : i32
    %c0_i32_1 = arith.constant 0 : i32
    return %c0_i32, %c0_i32_0 : i32, i32
  }
  func.func @transform_7(%arg0: i32, %arg1: i32) -> (i32, i32) {
    %c0_i32 = arith.constant 0 : i32
    %c0_i32_0 = arith.constant 0 : i32
    %c0_i32_1 = arith.constant 0 : i32
    return %c0_i32, %c0_i32_0 : i32, i32
  }
  func.func @transform_8(%arg0: i32, %arg1: i32) -> (i32, i32) {
    %c0_i32 = arith.constant 0 : i32
    %c0_i32_0 = arith.constant 0 : i32
    %c0_i32_1 = arith.constant 0 : i32
    return %c0_i32, %c0_i32_0 : i32, i32
  }
  func.func @transform_9(%arg0: i32, %arg1: i32) -> (i32, i32) {
    %c0_i32 = arith.constant 0 : i32
    %c0_i32_0 = arith.constant 0 : i32
    %c0_i32_1 = arith.constant 0 : i32
    return %c0_i32, %c0_i32_0 : i32, i32
  }
  func.func @transform_10(%arg0: i32, %arg1: i32) -> (i32, i32) {
    %c0_i32 = arith.constant 0 : i32
    %c0_i32_0 = arith.constant 0 : i32
    %c0_i32_1 = arith.constant 0 : i32
    return %c0_i32, %c0_i32_0 : i32, i32
  }
  func.func @transform_11(%arg0: i32, %arg1: i32) -> (i32, i32, i32) {
    %c0_i32 = arith.constant 0 : i32
    %c0_i32_0 = arith.constant 0 : i32
    return %arg0, %arg1, %c0_i32 : i32, i32, i32
  }
  func.func @transform_12(%arg0: i32, %arg1: i32) -> (i32, i32, i32, i32) {
    %c0_i32 = arith.constant 0 : i32
    %c0_i32_0 = arith.constant 0 : i32
    %c0_i32_1 = arith.constant 0 : i32
    return %arg0, %c0_i32, %arg1, %c0_i32_0 : i32, i32, i32, i32
  }
}

</mosaic_0001>

<llo_original>
// kernel: tpu_custom_call.1
$region0: #{tpu_custom_call.1}
  #allocation0 [shape = 'u32[]', space=smem, size = 0x4, offset = 0x4, fixed_abs, tag = 'smem constant byte address 0x4 - core index']
  #allocation1 [shape = 'u32[144,128]{1,0:T(1,128)}', space=vmem, size = 0x12000, scoped, tag = 'internal scratch']
  %s0 = inlined_call_operand.hbm [shape: bf16[2,8,32], index: 0, kind: input, shape index: {}]
  %s1 = inlined_call_operand.hbm [shape: bf16[2,8,32], index: 1, kind: input, shape index: {}]
  %s2 = inlined_call_operand.hbm [shape: bf16[2,8,32], index: 2, kind: input, shape index: {}]
  %s3 = inlined_call_operand.hbm [shape: bf16[32,32], index: 3, kind: input, shape index: {}]
  %s4 = inlined_call_operand.hbm [shape: f32[1,32], index: 4, kind: input, shape index: {}]
  %s5 = inlined_call_operand.hbm [shape: bf16[32,32], index: 5, kind: input, shape index: {}]
  %s6 = inlined_call_operand.hbm [shape: f32[1,32], index: 6, kind: input, shape index: {}]
  %s7 = inlined_call_operand.hbm [shape: bf16[32,32], index: 7, kind: input, shape index: {}]
  %s8 = inlined_call_operand.hbm [shape: f32[1,32], index: 8, kind: input, shape index: {}]
  %s9 = inlined_call_operand.vmem [shape: bf16[32,32], index: 9, kind: input, shape index: {}]
  %s10 = inlined_call_operand.vmem [shape: f32[1,32], index: 10, kind: input, shape index: {}]
  %s11 = inlined_call_operand.hbm [shape: f32[2,8,32], index: 11, kind: output, shape index: {0}]
  %s12 = inlined_call_operand.hbm [shape: f32[2,4,8,8], index: 12, kind: output, shape index: {1}]
  %13 = xla_tuple %s11, %s12
  %s14 = sld [smem:[#allocation0]]
  $region121: #{tpu_custom_call.1} parent=0
    _
  %s16 = ssub.s32 1, %s14
  %s17 = scalar_select 0, %s16, %s14
  $region1: #{tpu_custom_call.1} parent=0
    #allocation2 [shape = 'u8[4096]{0}', space=vmem, size = 0x1000, scoped, tag = 'input window, operand 0']
    #allocation3 [shape = 's32[2]{0}', space=sflag, size = 0x8, scoped, tag = 'scoped memory for tpu_custom_call.1']
    #allocation4 [shape = 's32[2]{0}', space=sflag, size = 0x8, scoped, tag = 'scoped memory for tpu_custom_call.1']
    #allocation5 [shape = 'u8[4096]{0}', space=vmem, size = 0x1000, scoped, tag = 'input window, operand 1']
    #allocation6 [shape = 's32[2]{0}', space=sflag, size = 0x8, scoped, tag = 'scoped memory for tpu_custom_call.1']
    #allocation7 [shape = 'u8[4096]{0}', space=vmem, size = 0x1000, scoped, tag = 'input window, operand 2']
    #allocation8 [shape = 'u8[8192]{0}', space=vmem, size = 0x2000, scoped, tag = 'input window, operand 3, single buffered']
    #allocation9 [shape = 's32[1]{0}', space=sflag, size = 0x4, scoped, tag = 'scoped memory for tpu_custom_call.1']
    #allocation10 [shape = 'u8[512]{0}', space=vmem, size = 0x400, scoped, tag = 'input window, operand 4, single buffered']
    #allocation11 [shape = 'u8[8192]{0}', space=vmem, size = 0x2000, scoped, tag = 'input window, operand 5, single buffered']
    #allocation12 [shape = 's32[1]{0}', space=sflag, size = 0x4, scoped, tag = 'scoped memory for tpu_custom_call.1']
    #allocation13 [shape = 'u8[512]{0}', space=vmem, size = 0x400, scoped, tag = 'input window, operand 6, single buffered']
    #allocation14 [shape = 'u8[8192]{0}', space=vmem, size = 0x2000, scoped, tag = 'input window, operand 7, single buffered']
    #allocation15 [shape = 's32[1]{0}', space=sflag, size = 0x4, scoped, tag = 'scoped memory for tpu_custom_call.1']
    #allocation16 [shape = 'u8[512]{0}', space=vmem, size = 0x400, scoped, tag = 'input window, operand 8, single buffered']
    #allocation17 [shape = 'u8[8192]{0}', space=vmem, size = 0x2000, scoped, tag = 'output window, operand 0']
    #allocation18 [shape = 'u8[32768]{0}', space=vmem, size = 0x8000, scoped, tag = 'output window, operand 1']
    #allocation19 [shape = 's32[2]{0}', space=sflag, size = 0x8, scoped, tag = 'scoped memory for tpu_custom_call.1']
    %18 = vsyncpa [#allocation3], 0
    %s19 = scalar_lea.sflag [#allocation3], 1
    %20 = vsyncpa %s19, 0
    %21 = vsyncpa [#allocation6], 0
    %s22 = scalar_lea.sflag [#allocation6], 1
    %23 = vsyncpa %s22, 0
    %24 = vsyncpa [#allocation9], 0
    %25 = vsyncpa [#allocation12], 0
    %26 = vsyncpa [#allocation15], 0
    %27 = vsyncpa [#allocation4], 0
    %s28 = scalar_lea.sflag [#allocation4], 1
    %29 = vsyncpa %s28, 0
    %30 = vsyncpa [#allocation19], 0
    %s31 = scalar_lea.sflag [#allocation19], 1
    %32 = vsyncpa %s31, 0
    loop: start=0, step=1, limit=4
    $region2: #{tpu_custom_call.1} parent=1 // loop_pre_header
      _
    $region3: #{tpu_custom_call.1} parent=1 // loop_header
      %s34 = sphi 0, %s38
      %p35 = scmp.ge.s32.totalorder %s34, 4
      %s41 = sphi 0, %s53
      %s42 = sphi 0, %s49
      %s43 = sphi 0, %s41
      %s44 = sphi 0, %s42
      %s45 = sphi 0, %s43
      %s46 = sphi 0, %s44
      %s58 = sphi 0, %s60
      %s61 = sphi 0, %s58
      %s62 = sphi 0, %s61
      %s78 = sphi 0, %s62
      %s84 = sphi 0, %s86
      %s87 = sphi 0, %s84
      %s88 = sphi 0, %s87
      %s104 = sphi 0, %s88
      %s110 = sphi 0, %s112
      %s113 = sphi 0, %s110
      %s114 = sphi 0, %s113
      %s130 = sphi 0, %s114
      %s134 = sphi 0, %s134
      %s136 = sphi 0, %s134
      %s137 = sphi 0, %s136
      %s151 = sphi 0, %s137
      %s155 = sphi 0, %s155
      %s157 = sphi 0, %s155
      %s158 = sphi 0, %s157
      %s172 = sphi 0, %s158
      %s176 = sphi 0, %s176
      %s178 = sphi 0, %s176
      %s179 = sphi 0, %s178
      %s193 = sphi 0, %s179
      %s197 = sphi 0, %s197
      %s199 = sphi 0, %s197
      %s200 = sphi 0, %s199
      %s214 = sphi 0, %s200
      %s218 = sphi 0, %s218
      %s220 = sphi 0, %s218
      %s221 = sphi 0, %s220
      %s235 = sphi 0, %s221
      %s239 = sphi 0, %s239
      %s241 = sphi 0, %s239
      %s242 = sphi 0, %s241
      %s256 = sphi 0, %s242
      %s260 = sphi 0, %s260
      %s262 = sphi 0, %s260
      %s263 = sphi 0, %s262
      %s277 = sphi 0, %s263
      %s281 = sphi 0, %s281
      %s283 = sphi 0, %s281
      %s284 = sphi 0, %s283
      %s298 = sphi 0, %s284
      %s306 = sphi 0, %s308
      %s309 = sphi 0, %s306
      %s310 = sphi 0, %s309
      %s326 = sphi 0, %s310
      %s334 = sphi 0, %s336
      %s337 = sphi 0, %s334
      %s338 = sphi 0, %s337
      %s354 = sphi 0, %s338
    $region4: #{tpu_custom_call.1} parent=1 // loop_header_branch
      %37 = sbr.rel (%p35) target = $region8
    $region5: #{tpu_custom_call.1} parent=1 // loop_body
      %s39 = ssub.s32 %s34, 1
      %s40 = ssub.s32 %s34, 2
      %s47 = sadd.s32 1, %s42
      %p48 = scmp.ge.s32.totalorder %s47, 1
      %s49 = scalar_select %p48, 0, %s47
      %s50 = sadd.s32 1, %s41
      %s51 = scalar_select %p48, %s50, %s41
      %p52 = scmp.ge.s32.totalorder %s51, 2
      %s53 = scalar_select %p52, 0, %s51
      %s54 = ssub.s32 %s41, %s53
      %s55 = ssub.s32 %s42, %s49
      %s56 = sor.u32 %s54, %s55
      %p57 = scmp.eq.s32.totalorder %s56, 0
      %s59 = sadd.s32 %s58, 1
      %s60 = scalar_select %p57, %s58, %s59
      %p63 = pneg %p57
      %p64 = scmp.eq.s32.totalorder %s34, 1
      %p65 = por %p63, %p64
      %p66 = scmp.ne.s32.totalorder %s58, %s61
      %p67 = scmp.eq.s32.totalorder %s34, 0
      %p68 = por %p66, %p67
      %p69 = scmp.ne.s32.totalorder %s58, %s61
      %p70 = scmp.eq.s32.totalorder %s39, 1
      %p71 = por %p69, %p70
      %p72 = scmp.ne.s32.totalorder %s61, %s62
      %p73 = scmp.eq.s32.totalorder %s39, 0
      %p74 = por %p72, %p73
      %p75 = scmp.ne.s32.totalorder %s61, %s62
      %p76 = scmp.eq.s32.totalorder %s40, 1
      %p77 = por %p75, %p76
      %p79 = scmp.ne.s32.totalorder %s62, %s78
      %p80 = scmp.eq.s32.totalorder %s40, 0
      %p81 = por %p79, %p80
      %s82 = ssub.s32 %s41, %s53
      %p83 = scmp.eq.s32.totalorder %s82, 0
      %s85 = sadd.s32 %s84, 1
      %s86 = scalar_select %p83, %s84, %s85
      %p89 = pneg %p83
      %p90 = scmp.eq.s32.totalorder %s34, 1
      %p91 = por %p89, %p90
      %p92 = scmp.ne.s32.totalorder %s84, %s87
      %p93 = scmp.eq.s32.totalorder %s34, 0
      %p94 = por %p92, %p93
      %p95 = scmp.ne.s32.totalorder %s84, %s87
      %p96 = scmp.eq.s32.totalorder %s39, 1
      %p97 = por %p95, %p96
      %p98 = scmp.ne.s32.totalorder %s87, %s88
      %p99 = scmp.eq.s32.totalorder %s39, 0
      %p100 = por %p98, %p99
      %p101 = scmp.ne.s32.totalorder %s87, %s88
      %p102 = scmp.eq.s32.totalorder %s40, 1
      %p103 = por %p101, %p102
      %p105 = scmp.ne.s32.totalorder %s88, %s104
      %p106 = scmp.eq.s32.totalorder %s40, 0
      %p107 = por %p105, %p106
      %s108 = ssub.s32 %s41, %s53
      %p109 = scmp.eq.s32.totalorder %s108, 0
      %s111 = sadd.s32 %s110, 1
      %s112 = scalar_select %p109, %s110, %s111
      %p115 = pneg %p109
      %p116 = scmp.eq.s32.totalorder %s34, 1
      %p117 = por %p115, %p116
      %p118 = scmp.ne.s32.totalorder %s110, %s113
      %p119 = scmp.eq.s32.totalorder %s34, 0
      %p120 = por %p118, %p119
      %p121 = scmp.ne.s32.totalorder %s110, %s113
      %p122 = scmp.eq.s32.totalorder %s39, 1
      %p123 = por %p121, %p122
      %p124 = scmp.ne.s32.totalorder %s113, %s114
      %p125 = scmp.eq.s32.totalorder %s39, 0
      %p126 = por %p124, %p125
      %p127 = scmp.ne.s32.totalorder %s113, %s114
      %p128 = scmp.eq.s32.totalorder %s40, 1
      %p129 = por %p127, %p128
      %p131 = scmp.ne.s32.totalorder %s114, %s130
      %p132 = scmp.eq.s32.totalorder %s40, 0
      %p133 = por %p131, %p132
      %s135 = sadd.s32 %s134, 1
      %p138 = scmp.eq.s32.totalorder %s34, 1
      %p139 = scmp.ne.s32.totalorder %s134, %s136
      %p140 = scmp.eq.s32.totalorder %s34, 0
      %p141 = por %p139, %p140
      %p142 = scmp.ne.s32.totalorder %s134, %s136
      %p143 = scmp.eq.s32.totalorder %s39, 1
      %p144 = por %p142, %p143
      %p145 = scmp.ne.s32.totalorder %s136, %s137
      %p146 = scmp.eq.s32.totalorder %s39, 0
      %p147 = por %p145, %p146
      %p148 = scmp.ne.s32.totalorder %s136, %s137
      %p149 = scmp.eq.s32.totalorder %s40, 1
      %p150 = por %p148, %p149
      %p152 = scmp.ne.s32.totalorder %s137, %s151
      %p153 = scmp.eq.s32.totalorder %s40, 0
      %p154 = por %p152, %p153
      %s156 = sadd.s32 %s155, 1
      %p159 = scmp.eq.s32.totalorder %s34, 1
      %p160 = scmp.ne.s32.totalorder %s155, %s157
      %p161 = scmp.eq.s32.totalorder %s34, 0
      %p162 = por %p160, %p161
      %p163 = scmp.ne.s32.totalorder %s155, %s157
      %p164 = scmp.eq.s32.totalorder %s39, 1
      %p165 = por %p163, %p164
      %p166 = scmp.ne.s32.totalorder %s157, %s158
      %p167 = scmp.eq.s32.totalorder %s39, 0
      %p168 = por %p166, %p167
      %p169 = scmp.ne.s32.totalorder %s157, %s158
      %p170 = scmp.eq.s32.totalorder %s40, 1
      %p171 = por %p169, %p170
      %p173 = scmp.ne.s32.totalorder %s158, %s172
      %p174 = scmp.eq.s32.totalorder %s40, 0
      %p175 = por %p173, %p174
      %s177 = sadd.s32 %s176, 1
      %p180 = scmp.eq.s32.totalorder %s34, 1
      %p181 = scmp.ne.s32.totalorder %s176, %s178
      %p182 = scmp.eq.s32.totalorder %s34, 0
      %p183 = por %p181, %p182
      %p184 = scmp.ne.s32.totalorder %s176, %s178
      %p185 = scmp.eq.s32.totalorder %s39, 1
      %p186 = por %p184, %p185
      %p187 = scmp.ne.s32.totalorder %s178, %s179
      %p188 = scmp.eq.s32.totalorder %s39, 0
      %p189 = por %p187, %p188
      %p190 = scmp.ne.s32.totalorder %s178, %s179
      %p191 = scmp.eq.s32.totalorder %s40, 1
      %p192 = por %p190, %p191
      %p194 = scmp.ne.s32.totalorder %s179, %s193
      %p195 = scmp.eq.s32.totalorder %s40, 0
      %p196 = por %p194, %p195
      %s198 = sadd.s32 %s197, 1
      %p201 = scmp.eq.s32.totalorder %s34, 1
      %p202 = scmp.ne.s32.totalorder %s197, %s199
      %p203 = scmp.eq.s32.totalorder %s34, 0
      %p204 = por %p202, %p203
      %p205 = scmp.ne.s32.totalorder %s197, %s199
      %p206 = scmp.eq.s32.totalorder %s39, 1
      %p207 = por %p205, %p206
      %p208 = scmp.ne.s32.totalorder %s199, %s200
      %p209 = scmp.eq.s32.totalorder %s39, 0
      %p210 = por %p208, %p209
      %p211 = scmp.ne.s32.totalorder %s199, %s200
      %p212 = scmp.eq.s32.totalorder %s40, 1
      %p213 = por %p211, %p212
      %p215 = scmp.ne.s32.totalorder %s200, %s214
      %p216 = scmp.eq.s32.totalorder %s40, 0
      %p217 = por %p215, %p216
      %s219 = sadd.s32 %s218, 1
      %p222 = scmp.eq.s32.totalorder %s34, 1
      %p223 = scmp.ne.s32.totalorder %s218, %s220
      %p224 = scmp.eq.s32.totalorder %s34, 0
      %p225 = por %p223, %p224
      %p226 = scmp.ne.s32.totalorder %s218, %s220
      %p227 = scmp.eq.s32.totalorder %s39, 1
      %p228 = por %p226, %p227
      %p229 = scmp.ne.s32.totalorder %s220, %s221
      %p230 = scmp.eq.s32.totalorder %s39, 0
      %p231 = por %p229, %p230
      %p232 = scmp.ne.s32.totalorder %s220, %s221
      %p233 = scmp.eq.s32.totalorder %s40, 1
      %p234 = por %p232, %p233
      %p236 = scmp.ne.s32.totalorder %s221, %s235
      %p237 = scmp.eq.s32.totalorder %s40, 0
      %p238 = por %p236, %p237
      %s240 = sadd.s32 %s239, 1
      %p243 = scmp.eq.s32.totalorder %s34, 1
      %p244 = scmp.ne.s32.totalorder %s239, %s241
      %p245 = scmp.eq.s32.totalorder %s34, 0
      %p246 = por %p244, %p245
      %p247 = scmp.ne.s32.totalorder %s239, %s241
      %p248 = scmp.eq.s32.totalorder %s39, 1
      %p249 = por %p247, %p248
      %p250 = scmp.ne.s32.totalorder %s241, %s242
      %p251 = scmp.eq.s32.totalorder %s39, 0
      %p252 = por %p250, %p251
      %p253 = scmp.ne.s32.totalorder %s241, %s242
      %p254 = scmp.eq.s32.totalorder %s40, 1
      %p255 = por %p253, %p254
      %p257 = scmp.ne.s32.totalorder %s242, %s256
      %p258 = scmp.eq.s32.totalorder %s40, 0
      %p259 = por %p257, %p258
      %s261 = sadd.s32 %s260, 1
      %p264 = scmp.eq.s32.totalorder %s34, 1
      %p265 = scmp.ne.s32.totalorder %s260, %s262
      %p266 = scmp.eq.s32.totalorder %s34, 0
      %p267 = por %p265, %p266
      %p268 = scmp.ne.s32.totalorder %s260, %s262
      %p269 = scmp.eq.s32.totalorder %s39, 1
      %p270 = por %p268, %p269
      %p271 = scmp.ne.s32.totalorder %s262, %s263
      %p272 = scmp.eq.s32.totalorder %s39, 0
      %p273 = por %p271, %p272
      %p274 = scmp.ne.s32.totalorder %s262, %s263
      %p275 = scmp.eq.s32.totalorder %s40, 1
      %p276 = por %p274, %p275
      %p278 = scmp.ne.s32.totalorder %s263, %s277
      %p279 = scmp.eq.s32.totalorder %s40, 0
      %p280 = por %p278, %p279
      %s282 = sadd.s32 %s281, 1
      %p285 = scmp.eq.s32.totalorder %s34, 1
      %p286 = scmp.ne.s32.totalorder %s281, %s283
      %p287 = scmp.eq.s32.totalorder %s34, 0
      %p288 = por %p286, %p287
      %p289 = scmp.ne.s32.totalorder %s281, %s283
      %p290 = scmp.eq.s32.totalorder %s39, 1
      %p291 = por %p289, %p290
      %p292 = scmp.ne.s32.totalorder %s283, %s284
      %p293 = scmp.eq.s32.totalorder %s39, 0
      %p294 = por %p292, %p293
      %p295 = scmp.ne.s32.totalorder %s283, %s284
      %p296 = scmp.eq.s32.totalorder %s40, 1
      %p297 = por %p295, %p296
      %p299 = scmp.ne.s32.totalorder %s284, %s298
      %p300 = scmp.eq.s32.totalorder %s40, 0
      %p301 = por %p299, %p300
      %s302 = ssub.s32 %s41, %s53
      %s303 = ssub.s32 %s42, %s49
      %s304 = sor.u32 %s302, %s303
      %p305 = scmp.eq.s32.totalorder %s304, 0
      %s307 = sadd.s32 %s306, 1
      %s308 = scalar_select %p305, %s306, %s307
      %p311 = pneg %p305
      %p312 = scmp.eq.s32.totalorder %s34, 1
      %p313 = por %p311, %p312
      %p314 = scmp.ne.s32.totalorder %s306, %s309
      %p315 = scmp.eq.s32.totalorder %s34, 0
      %p316 = por %p314, %p315
      %p317 = scmp.ne.s32.totalorder %s306, %s309
      %p318 = scmp.eq.s32.totalorder %s39, 1
      %p319 = por %p317, %p318
      %p320 = scmp.ne.s32.totalorder %s309, %s310
      %p321 = scmp.eq.s32.totalorder %s39, 0
      %p322 = por %p320, %p321
      %p323 = scmp.ne.s32.totalorder %s309, %s310
      %p324 = scmp.eq.s32.totalorder %s40, 1
      %p325 = por %p323, %p324
      %p327 = scmp.ne.s32.totalorder %s310, %s326
      %p328 = scmp.eq.s32.totalorder %s40, 0
      %p329 = por %p327, %p328
      %s330 = ssub.s32 %s41, %s53
      %s331 = ssub.s32 %s42, %s49
      %s332 = sor.u32 %s330, %s331
      %p333 = scmp.eq.s32.totalorder %s332, 0
      %s335 = sadd.s32 %s334, 1
      %s336 = scalar_select %p333, %s334, %s335
      %p339 = pneg %p333
      %p340 = scmp.eq.s32.totalorder %s34, 1
      %p341 = por %p339, %p340
      %p342 = scmp.ne.s32.totalorder %s334, %s337
      %p343 = scmp.eq.s32.totalorder %s34, 0
      %p344 = por %p342, %p343
      %p345 = scmp.ne.s32.totalorder %s334, %s337
      %p346 = scmp.eq.s32.totalorder %s39, 1
      %p347 = por %p345, %p346
      %p348 = scmp.ne.s32.totalorder %s337, %s338
      %p349 = scmp.eq.s32.totalorder %s39, 0
      %p350 = por %p348, %p349
      %p351 = scmp.ne.s32.totalorder %s337, %s338
      %p352 = scmp.eq.s32.totalorder %s40, 1
      %p353 = por %p351, %p352
      %p355 = scmp.ne.s32.totalorder %s338, %s354
      %p356 = scmp.eq.s32.totalorder %s40, 0
      %p357 = por %p355, %p356
      %p358 = scmp.le.s32.totalorder 1, %s34
      %p359 = scmp.lt.s32.totalorder %s34, 3
      %p360 = pnand %p358, %p359
      %p361 = pneg %p360
      // Predicated region
      $region9: #{tpu_custom_call.1} parent=5 // pred_check
        _
      $region10: #{tpu_custom_call.1} parent=5 // pred_check_branch
        %363 = sbr.rel (%p360) target = $region12
      $region11: #{tpu_custom_call.1} parent=5 // pred_region
        %s364 = ssub.s32 %s34, 1
        // Predicated region
        $region13: #{tpu_custom_call.1} parent=11 // pred_check
          %p365 = pneg %p147
        $region14: #{tpu_custom_call.1} parent=11 // pred_check_branch
          %367 = sbr.rel (%p365) target = $region16
        $region15: #{tpu_custom_call.1} parent=11 // pred_region
          %s369 = ssub.s32 256, 256
          %370 = vsyncadd [#allocation9], %s369
          %s371 = sshll.u32 [#allocation8], 4
          %s372 = int_to_ptr.vmem [resolvable:$true] %s371
          %377 = dma.hbm_to_vmem [thread:$0]  %s3, 256, %s372, [#allocation9], 64, 64, 4
        $region16: #{tpu_custom_call.1} parent=11 // pred_fallthru
          _
        // Predicated region
        $region17: #{tpu_custom_call.1} parent=11 // pred_check
          %p378 = pneg %p168
        $region18: #{tpu_custom_call.1} parent=11 // pred_check_branch
          %380 = sbr.rel (%p378) target = $region20
        $region19: #{tpu_custom_call.1} parent=11 // pred_region
          %s382 = ssub.s32 16, 16
          %383 = vsyncadd [#allocation9], %s382
          %s385 = sshll.u32 [#allocation10], 4
          %s386 = int_to_ptr.vmem [resolvable:$true] %s385
          %388 = dma.hbm_to_vmem [thread:$0]  %s4, 16, %s386, [#allocation9]
        $region20: #{tpu_custom_call.1} parent=11 // pred_fallthru
          _
        // Predicated region
        $region21: #{tpu_custom_call.1} parent=11 // pred_check
          %p389 = pneg %p189
        $region22: #{tpu_custom_call.1} parent=11 // pred_check_branch
          %391 = sbr.rel (%p389) target = $region24
        $region23: #{tpu_custom_call.1} parent=11 // pred_region
          %s393 = ssub.s32 256, 256
          %394 = vsyncadd [#allocation12], %s393
          %s395 = sshll.u32 [#allocation11], 4
          %s396 = int_to_ptr.vmem [resolvable:$true] %s395
          %401 = dma.hbm_to_vmem [thread:$0]  %s5, 256, %s396, [#allocation12], 64, 64, 4
        $region24: #{tpu_custom_call.1} parent=11 // pred_fallthru
          _
        // Predicated region
        $region25: #{tpu_custom_call.1} parent=11 // pred_check
          %p402 = pneg %p210
        $region26: #{tpu_custom_call.1} parent=11 // pred_check_branch
          %404 = sbr.rel (%p402) target = $region28
        $region27: #{tpu_custom_call.1} parent=11 // pred_region
          %s406 = ssub.s32 16, 16
          %407 = vsyncadd [#allocation12], %s406
          %s409 = sshll.u32 [#allocation13], 4
          %s410 = int_to_ptr.vmem [resolvable:$true] %s409
          %412 = dma.hbm_to_vmem [thread:$0]  %s6, 16, %s410, [#allocation12]
        $region28: #{tpu_custom_call.1} parent=11 // pred_fallthru
          _
        // Predicated region
        $region29: #{tpu_custom_call.1} parent=11 // pred_check
          %p413 = pneg %p231
        $region30: #{tpu_custom_call.1} parent=11 // pred_check_branch
          %415 = sbr.rel (%p413) target = $region32
        $region31: #{tpu_custom_call.1} parent=11 // pred_region
          %s417 = ssub.s32 256, 256
          %418 = vsyncadd [#allocation15], %s417
          %s419 = sshll.u32 [#allocation14], 4
          %s420 = int_to_ptr.vmem [resolvable:$true] %s419
          %425 = dma.hbm_to_vmem [thread:$0]  %s7, 256, %s420, [#allocation15], 64, 64, 4
        $region32: #{tpu_custom_call.1} parent=11 // pred_fallthru
          _
        // Predicated region
        $region33: #{tpu_custom_call.1} parent=11 // pred_check
          %p426 = pneg %p252
        $region34: #{tpu_custom_call.1} parent=11 // pred_check_branch
          %428 = sbr.rel (%p426) target = $region36
        $region35: #{tpu_custom_call.1} parent=11 // pred_region
          %s430 = ssub.s32 16, 16
          %431 = vsyncadd [#allocation15], %s430
          %s433 = sshll.u32 [#allocation16], 4
          %s434 = int_to_ptr.vmem [resolvable:$true] %s433
          %436 = dma.hbm_to_vmem [thread:$0]  %s8, 16, %s434, [#allocation15]
        $region36: #{tpu_custom_call.1} parent=11 // pred_fallthru
          _
        // Predicated region
        $region37: #{tpu_custom_call.1} parent=11 // pred_check
          %p437 = pneg %p273
        $region38: #{tpu_custom_call.1} parent=11 // pred_check_branch
          %439 = sbr.rel (%p437) target = $region40
        $region39: #{tpu_custom_call.1} parent=11 // pred_region
          _
        $region40: #{tpu_custom_call.1} parent=11 // pred_fallthru
          _
        // Predicated region
        $region41: #{tpu_custom_call.1} parent=11 // pred_check
          %p440 = pneg %p294
        $region42: #{tpu_custom_call.1} parent=11 // pred_check_branch
          %442 = sbr.rel (%p440) target = $region44
        $region43: #{tpu_custom_call.1} parent=11 // pred_region
          _
        $region44: #{tpu_custom_call.1} parent=11 // pred_fallthru
          _
      $region12: #{tpu_custom_call.1} parent=5 // pred_fallthru
        _
      %p443 = scmp.lt.s32.totalorder %s34, 2
      // Predicated region
      $region45: #{tpu_custom_call.1} parent=5 // pred_check
        %p444 = pneg %p443
      $region46: #{tpu_custom_call.1} parent=5 // pred_check_branch
        %446 = sbr.rel (%p444) target = $region48
      $region47: #{tpu_custom_call.1} parent=5 // pred_region
        // Predicated region
        $region49: #{tpu_custom_call.1} parent=47 // pred_check
          %p447 = pneg %p68
        $region50: #{tpu_custom_call.1} parent=47 // pred_check_branch
          %449 = sbr.rel (%p447) target = $region52
        $region51: #{tpu_custom_call.1} parent=47 // pred_region
          %s450 = sand.u32 %s58, 1
          %s451 = scalar_lea.sflag [#allocation3], %s450
          %s452 = sand.u32 %s58, 1
          %s453 = smul.addr %s452, 4
          %s454 = scalar_lea.vmem [#allocation2], %s453
          %s456 = ssub.s32 64, 64
          %457 = vsyncadd %s451, %s456
          %s458 = sadd.s32 %s42, %s41
          %s459 = smul.addr %s458, 64
          %s460 = scalar_lea.hbm %s0, %s459
          %s462 = sshll.u32 %s454, 4
          %s463 = int_to_ptr.vmem [resolvable:$true] %s462
          %465 = dma.hbm_to_vmem [thread:$0]  %s460, 64, %s463, %s451
        $region52: #{tpu_custom_call.1} parent=47 // pred_fallthru
          _
        // Predicated region
        $region53: #{tpu_custom_call.1} parent=47 // pred_check
          %p466 = pneg %p94
        $region54: #{tpu_custom_call.1} parent=47 // pred_check_branch
          %468 = sbr.rel (%p466) target = $region56
        $region55: #{tpu_custom_call.1} parent=47 // pred_region
          %s469 = sand.u32 %s34, 1
          %s470 = scalar_lea.sflag [#allocation6], %s469
          %s471 = sand.u32 %s84, 1
          %s472 = smul.addr %s471, 4
          %s473 = scalar_lea.vmem [#allocation5], %s472
          %s475 = ssub.s32 64, 64
          %476 = vsyncadd %s470, %s475
          %s477 = smul.addr %s41, 64
          %s478 = scalar_lea.hbm %s1, %s477
          %s480 = sshll.u32 %s473, 4
          %s481 = int_to_ptr.vmem [resolvable:$true] %s480
          %483 = dma.hbm_to_vmem [thread:$0]  %s478, 64, %s481, %s470
        $region56: #{tpu_custom_call.1} parent=47 // pred_fallthru
          _
        // Predicated region
        $region57: #{tpu_custom_call.1} parent=47 // pred_check
          %p484 = pneg %p120
        $region58: #{tpu_custom_call.1} parent=47 // pred_check_branch
          %486 = sbr.rel (%p484) target = $region60
        $region59: #{tpu_custom_call.1} parent=47 // pred_region
          %s487 = sand.u32 %s34, 1
          %s488 = scalar_lea.sflag [#allocation6], %s487
          %s489 = sand.u32 %s110, 1
          %s490 = smul.addr %s489, 4
          %s491 = scalar_lea.vmem [#allocation7], %s490
          %s493 = ssub.s32 64, 64
          %494 = vsyncadd %s488, %s493
          %s495 = smul.addr %s41, 64
          %s496 = scalar_lea.hbm %s2, %s495
          %s498 = sshll.u32 %s491, 4
          %s499 = int_to_ptr.vmem [resolvable:$true] %s498
          %501 = dma.hbm_to_vmem [thread:$0]  %s496, 64, %s499, %s488
        $region60: #{tpu_custom_call.1} parent=47 // pred_fallthru
          _
      $region48: #{tpu_custom_call.1} parent=5 // pred_fallthru
        _
      %p502 = scmp.le.s32.totalorder 1, %s34
      %p503 = scmp.lt.s32.totalorder %s34, 3
      %p504 = pnand %p502, %p503
      %p505 = pneg %p504
      // Predicated region
      $region61: #{tpu_custom_call.1} parent=5 // pred_check
        _
      $region62: #{tpu_custom_call.1} parent=5 // pred_check_branch
        %507 = sbr.rel (%p504) target = $region64
      $region63: #{tpu_custom_call.1} parent=5 // pred_region
        %s508 = ssub.s32 %s34, 1
        %s509 = sand.u32 %s61, 1
        %s510 = scalar_lea.sflag [#allocation3], %s509
        %s511 = sand.u32 %s61, 1
        %s512 = smul.addr %s511, 4
        %s513 = scalar_lea.vmem [#allocation2], %s512
        // Predicated region
        $region65: #{tpu_custom_call.1} parent=63 // pred_check
          %p514 = pneg %p74
        $region66: #{tpu_custom_call.1} parent=63 // pred_check_branch
          %516 = sbr.rel (%p514) target = $region68
        $region67: #{tpu_custom_call.1} parent=63 // pred_region
          %517 = dma.done %s510, 64
        $region68: #{tpu_custom_call.1} parent=63 // pred_fallthru
          _
        %s518 = sand.u32 %s39, 1
        %s519 = scalar_lea.sflag [#allocation6], %s518
        %s520 = sand.u32 %s87, 1
        %s521 = smul.addr %s520, 4
        %s522 = scalar_lea.vmem [#allocation5], %s521
        // Predicated region
        $region69: #{tpu_custom_call.1} parent=63 // pred_check
          %p523 = pneg %p100
        $region70: #{tpu_custom_call.1} parent=63 // pred_check_branch
          %525 = sbr.rel (%p523) target = $region72
        $region71: #{tpu_custom_call.1} parent=63 // pred_region
          %526 = dma.done %s519, 64
        $region72: #{tpu_custom_call.1} parent=63 // pred_fallthru
          _
        %s527 = sand.u32 %s39, 1
        %s528 = scalar_lea.sflag [#allocation6], %s527
        %s529 = sand.u32 %s113, 1
        %s530 = smul.addr %s529, 4
        %s531 = scalar_lea.vmem [#allocation7], %s530
        // Predicated region
        $region73: #{tpu_custom_call.1} parent=63 // pred_check
          %p532 = pneg %p126
        $region74: #{tpu_custom_call.1} parent=63 // pred_check_branch
          %534 = sbr.rel (%p532) target = $region76
        $region75: #{tpu_custom_call.1} parent=63 // pred_region
          %535 = dma.done %s528, 64
        $region76: #{tpu_custom_call.1} parent=63 // pred_fallthru
          _
        // Predicated region
        $region77: #{tpu_custom_call.1} parent=63 // pred_check
          %p536 = pneg %p147
        $region78: #{tpu_custom_call.1} parent=63 // pred_check_branch
          %538 = sbr.rel (%p536) target = $region80
        $region79: #{tpu_custom_call.1} parent=63 // pred_region
          %539 = dma.done [#allocation9], 256
        $region80: #{tpu_custom_call.1} parent=63 // pred_fallthru
          _
        // Predicated region
        $region81: #{tpu_custom_call.1} parent=63 // pred_check
          %p540 = pneg %p168
        $region82: #{tpu_custom_call.1} parent=63 // pred_check_branch
          %542 = sbr.rel (%p540) target = $region84
        $region83: #{tpu_custom_call.1} parent=63 // pred_region
          %543 = dma.done [#allocation9], 16
        $region84: #{tpu_custom_call.1} parent=63 // pred_fallthru
          _
        // Predicated region
        $region85: #{tpu_custom_call.1} parent=63 // pred_check
          %p544 = pneg %p189
        $region86: #{tpu_custom_call.1} parent=63 // pred_check_branch
          %546 = sbr.rel (%p544) target = $region88
        $region87: #{tpu_custom_call.1} parent=63 // pred_region
          %547 = dma.done [#allocation12], 256
        $region88: #{tpu_custom_call.1} parent=63 // pred_fallthru
          _
        // Predicated region
        $region89: #{tpu_custom_call.1} parent=63 // pred_check
          %p548 = pneg %p210
        $region90: #{tpu_custom_call.1} parent=63 // pred_check_branch
          %550 = sbr.rel (%p548) target = $region92
        $region91: #{tpu_custom_call.1} parent=63 // pred_region
          %551 = dma.done [#allocation12], 16
        $region92: #{tpu_custom_call.1} parent=63 // pred_fallthru
          _
        // Predicated region
        $region93: #{tpu_custom_call.1} parent=63 // pred_check
          %p552 = pneg %p231
        $region94: #{tpu_custom_call.1} parent=63 // pred_check_branch
          %554 = sbr.rel (%p552) target = $region96
        $region95: #{tpu_custom_call.1} parent=63 // pred_region
          %555 = dma.done [#allocation15], 256
        $region96: #{tpu_custom_call.1} parent=63 // pred_fallthru
          _
        // Predicated region
        $region97: #{tpu_custom_call.1} parent=63 // pred_check
          %p556 = pneg %p252
        $region98: #{tpu_custom_call.1} parent=63 // pred_check_branch
          %558 = sbr.rel (%p556) target = $region100
        $region99: #{tpu_custom_call.1} parent=63 // pred_region
          %559 = dma.done [#allocation15], 16
        $region100: #{tpu_custom_call.1} parent=63 // pred_fallthru
          _
        %s560 = sand.u32 %s61, 1
        %s561 = scalar_lea.sflag [#allocation3], %s560
        %s562 = sand.u32 %s61, 1
        %s563 = smul.addr %s562, 4
        %s564 = scalar_lea.vmem [#allocation2], %s563
        %p565 = pneg %p74
        %p566 = pneg %p71
        %s567 = sand.u32 %s39, 1
        %s568 = scalar_lea.sflag [#allocation6], %s567
        %s569 = sand.u32 %s87, 1
        %s570 = smul.addr %s569, 4
        %s571 = scalar_lea.vmem [#allocation5], %s570
        %p572 = pneg %p100
        %p573 = pneg %p97
        %s574 = sand.u32 %s39, 1
        %s575 = scalar_lea.sflag [#allocation6], %s574
        %s576 = sand.u32 %s113, 1
        %s577 = smul.addr %s576, 4
        %s578 = scalar_lea.vmem [#allocation7], %s577
        %p579 = pneg %p126
        %p580 = pneg %p123
        %p581 = pneg %p147
        %p582 = pneg %p144
        %p583 = pneg %p168
        %p584 = pneg %p165
        %p585 = pneg %p189
        %p586 = pneg %p186
        %p587 = pneg %p210
        %p588 = pneg %p207
        %p589 = pneg %p231
        %p590 = pneg %p228
        %p591 = pneg %p252
        %p592 = pneg %p249
        %p593 = pneg %p273
        %p594 = pneg %p270
        %p595 = pneg %p294
        %p596 = pneg %p291
        %p597 = pneg %p322
        %p598 = pneg %p319
        %s599 = sand.u32 %s309, 1
        %s600 = scalar_lea.sflag [#allocation4], %s599
        %s601 = sand.u32 %s309, 1
        %s602 = smul.addr %s601, 8
        %s603 = scalar_lea.vmem [#allocation17], %s602
        %p604 = pneg %p350
        %p605 = pneg %p347
        %s606 = sand.u32 %s337, 1
        %s607 = scalar_lea.sflag [#allocation19], %s606
        %s608 = sand.u32 %s337, 1
        %s609 = smul.addr %s608, 32
        %s610 = scalar_lea.vmem [#allocation18], %s609
        %v612 = vld [vmem:[%s513] sm:$0xf]
        %v613 = vld [vmem:[%s522] sm:$0xf]
        %v614 = vld [vmem:[%s531] sm:$0xf]
        %v615 = vld [vmem:[#allocation8] sm:$0xf]
        %v616 = vld [vmem:[#allocation8 + $0x4] sm:$0xf]
        %v617 = vld [vmem:[#allocation8 + $0x8] sm:$0xf]
        %v618 = vld [vmem:[#allocation8 + $0xc] sm:$0xf]
        %v619 = vld [vmem:[#allocation10] sm:$0x1]
        %v621 = vlaneseq
        %v622 = vshrl.u32 %v621, 7
        %v623 = vsub.s32 0, %v622
        %v624 = vrot.slane %v619, %v623
        %v630 = vunpack.c.l.b16 %v615
        %v631 = vunpack.c.l.b16 %v616
        %v632 = vunpack.c.l.b16 %v617
        %v633 = vunpack.c.l.b16 %v618
        %v634 = vpack.c.b16 %v631, %v630
        %v635 = vpack.c.b16 %v633, %v632
        %vm638 = vcmask 261120
        %v640 = vsel %vm638, %v612, 0
        %642 = vmatprep.subr.bf16.mxu0 0
        %643 = vmatpush1.bf16.msra.mxu0 0
        %644 = vmatprep.subr.bf16.mxu0 0
        %645 = vmatpush1.bf16.msra.mxu0 0
        %646 = vmatprep.subr.bf16.mxu0 0
        %647 = vmatpush1.bf16.msra.mxu0 0
        %648 = vmatprep.subr.bf16.mxu0 0
        %649 = vmatpush1.bf16.msra.mxu0 0
        %650 = vmatprep.subr.bf16.mxu0 0
        %651 = vmatpush1.bf16.msra.mxu0 0
        %652 = vmatprep.subr.bf16.mxu0 0
        %653 = vmatpush1.bf16.msra.mxu0 0
        %654 = vmatprep.subr.bf16.mxu0 0
        %655 = vmatpush1.bf16.msra.mxu0 %v635
        %656 = vmatprep.subr.bf16.mxu0 0
        %657 = vmatpush1.bf16.msra.mxu0 %v634
        %658 = vmatprep.subr.bf16.mxu0 0
        %659 = vmatpush2.bf16.msra.mxu0 0
        %660 = vmatprep.subr.bf16.mxu0 0
        %661 = vmatpush2.bf16.msra.mxu0 0
        %662 = vmatprep.subr.bf16.mxu0 0
        %663 = vmatpush2.bf16.msra.mxu0 0
        %664 = vmatprep.subr.bf16.mxu0 0
        %665 = vmatpush2.bf16.msra.mxu0 0
        %666 = vmatprep.subr.bf16.mxu0 0
        %667 = vmatpush2.bf16.msra.mxu0 0
        %668 = vmatprep.subr.bf16.mxu0 0
        %669 = vmatpush2.bf16.msra.mxu0 0
        %670 = vmatprep.subr.bf16.mxu0 0
        %671 = vmatpush2.bf16.msra.mxu0 0
        %672 = vmatprep.subr.bf16.mxu0 0
        %673 = vmatpush2.bf16.msra.mxu0 0
        %674 = vmatprep.mubr.bf16.mxu0 0
        %675 = vmatmul.mubr.bf16.gmra.mxu0 %v640
        %v676 = vpop.f32.mrf.mxu0
        %v677 = vadd.f32 %v624, %v676
        %v678 = vpop.f32.mrf.mxu0
        %v679 = vpop.f32.mrf.mxu0
        %v680 = vpop.f32.mrf.mxu0
        %681 = vdwg.mxu0
        %v682 = vpack.c.bf16 %v677, %v677
        %v683 = vld [vmem:[#allocation11] sm:$0xf]
        %v684 = vld [vmem:[#allocation11 + $0x4] sm:$0xf]
        %v685 = vld [vmem:[#allocation11 + $0x8] sm:$0xf]
        %v686 = vld [vmem:[#allocation11 + $0xc] sm:$0xf]
        %v687 = vld [vmem:[#allocation13] sm:$0x1]
        %v689 = vlaneseq
        %v690 = vshrl.u32 %v689, 7
        %v691 = vsub.s32 0, %v690
        %v692 = vrot.slane %v687, %v691
        %v698 = vunpack.c.l.b16 %v683
        %v699 = vunpack.c.l.b16 %v684
        %v700 = vunpack.c.l.b16 %v685
        %v701 = vunpack.c.l.b16 %v686
        %v702 = vpack.c.b16 %v699, %v698
        %v703 = vpack.c.b16 %v701, %v700
        %v707 = vsel %vm638, %v613, 0
        %709 = vmatprep.subr.bf16.mxu0 0
        %710 = vmatpush1.bf16.msra.mxu0 0
        %711 = vmatprep.subr.bf16.mxu0 0
        %712 = vmatpush1.bf16.msra.mxu0 0
        %713 = vmatprep.subr.bf16.mxu0 0
        %714 = vmatpush1.bf16.msra.mxu0 0
        %715 = vmatprep.subr.bf16.mxu0 0
        %716 = vmatpush1.bf16.msra.mxu0 0
        %717 = vmatprep.subr.bf16.mxu0 0
        %718 = vmatpush1.bf16.msra.mxu0 0
        %719 = vmatprep.subr.bf16.mxu0 0
        %720 = vmatpush1.bf16.msra.mxu0 0
        %721 = vmatprep.subr.bf16.mxu0 0
        %722 = vmatpush1.bf16.msra.mxu0 %v703
        %723 = vmatprep.subr.bf16.mxu0 0
        %724 = vmatpush1.bf16.msra.mxu0 %v702
        %725 = vmatprep.subr.bf16.mxu0 0
        %726 = vmatpush2.bf16.msra.mxu0 0
        %727 = vmatprep.subr.bf16.mxu0 0
        %728 = vmatpush2.bf16.msra.mxu0 0
        %729 = vmatprep.subr.bf16.mxu0 0
        %730 = vmatpush2.bf16.msra.mxu0 0
        %731 = vmatprep.subr.bf16.mxu0 0
        %732 = vmatpush2.bf16.msra.mxu0 0
        %733 = vmatprep.subr.bf16.mxu0 0
        %734 = vmatpush2.bf16.msra.mxu0 0
        %735 = vmatprep.subr.bf16.mxu0 0
        %736 = vmatpush2.bf16.msra.mxu0 0
        %737 = vmatprep.subr.bf16.mxu0 0
        %738 = vmatpush2.bf16.msra.mxu0 0
        %739 = vmatprep.subr.bf16.mxu0 0
        %740 = vmatpush2.bf16.msra.mxu0 0
        %741 = vmatprep.mubr.bf16.mxu0 0
        %742 = vmatmul.mubr.bf16.gmra.mxu0 %v707
        %v743 = vpop.f32.mrf.mxu0
        %v744 = vadd.f32 %v692, %v743
        %v745 = vpop.f32.mrf.mxu0
        %v746 = vpop.f32.mrf.mxu0
        %v747 = vpop.f32.mrf.mxu0
        %748 = vdwg.mxu0
        %v749 = vpack.c.bf16 %v744, %v744
        %v750 = vld [vmem:[#allocation14] sm:$0xf]
        %v751 = vld [vmem:[#allocation14 + $0x4] sm:$0xf]
        %v752 = vld [vmem:[#allocation14 + $0x8] sm:$0xf]
        %v753 = vld [vmem:[#allocation14 + $0xc] sm:$0xf]
        %v754 = vld [vmem:[#allocation16] sm:$0x1]
        %v756 = vlaneseq
        %v757 = vshrl.u32 %v756, 7
        %v758 = vsub.s32 0, %v757
        %v759 = vrot.slane %v754, %v758
        %v765 = vunpack.c.l.b16 %v750
        %v766 = vunpack.c.l.b16 %v751
        %v767 = vunpack.c.l.b16 %v752
        %v768 = vunpack.c.l.b16 %v753
        %v769 = vpack.c.b16 %v766, %v765
        %v770 = vpack.c.b16 %v768, %v767
        %v774 = vsel %vm638, %v614, 0
        %776 = vmatprep.subr.bf16.mxu0 0
        %777 = vmatpush1.bf16.msra.mxu0 0
        %778 = vmatprep.subr.bf16.mxu0 0
        %779 = vmatpush1.bf16.msra.mxu0 0
        %780 = vmatprep.subr.bf16.mxu0 0
        %781 = vmatpush1.bf16.msra.mxu0 0
        %782 = vmatprep.subr.bf16.mxu0 0
        %783 = vmatpush1.bf16.msra.mxu0 0
        %784 = vmatprep.subr.bf16.mxu0 0
        %785 = vmatpush1.bf16.msra.mxu0 0
        %786 = vmatprep.subr.bf16.mxu0 0
        %787 = vmatpush1.bf16.msra.mxu0 0
        %788 = vmatprep.subr.bf16.mxu0 0
        %789 = vmatpush1.bf16.msra.mxu0 %v770
        %790 = vmatprep.subr.bf16.mxu0 0
        %791 = vmatpush1.bf16.msra.mxu0 %v769
        %792 = vmatprep.subr.bf16.mxu0 0
        %793 = vmatpush2.bf16.msra.mxu0 0
        %794 = vmatprep.subr.bf16.mxu0 0
        %795 = vmatpush2.bf16.msra.mxu0 0
        %796 = vmatprep.subr.bf16.mxu0 0
        %797 = vmatpush2.bf16.msra.mxu0 0
        %798 = vmatprep.subr.bf16.mxu0 0
        %799 = vmatpush2.bf16.msra.mxu0 0
        %800 = vmatprep.subr.bf16.mxu0 0
        %801 = vmatpush2.bf16.msra.mxu0 0
        %802 = vmatprep.subr.bf16.mxu0 0
        %803 = vmatpush2.bf16.msra.mxu0 0
        %804 = vmatprep.subr.bf16.mxu0 0
        %805 = vmatpush2.bf16.msra.mxu0 0
        %806 = vmatprep.subr.bf16.mxu0 0
        %807 = vmatpush2.bf16.msra.mxu0 0
        %808 = vmatprep.mubr.bf16.mxu0 0
        %809 = vmatmul.mubr.bf16.gmra.mxu0 %v774
        %v810 = vpop.f32.mrf.mxu0
        %v811 = vadd.f32 %v759, %v810
        %v812 = vpop.f32.mrf.mxu0
        %v813 = vpop.f32.mrf.mxu0
        %v814 = vpop.f32.mrf.mxu0
        %815 = vdwg.mxu0
        %v816 = vpack.c.bf16 %v811, %v811
        %vm817 = vcmask 64512
        %v819 = vsel %vm817, %v682, 0
        %v822 = vsel %vm817, %v749, 0
        %824 = vmatprep.subr.bf16.mxu0 0
        %825 = vmatpush1.bf16.xpose.msra.mxu0 0
        %826 = vmatprep.subr.bf16.mxu0 0
        %827 = vmatpush1.bf16.xpose.msra.mxu0 0
        %828 = vmatprep.subr.bf16.mxu0 0
        %829 = vmatpush1.bf16.xpose.msra.mxu0 0
        %830 = vmatprep.subr.bf16.mxu0 0
        %831 = vmatpush1.bf16.xpose.msra.mxu0 0
        %832 = vmatprep.subr.bf16.mxu0 0
        %833 = vmatpush1.bf16.xpose.msra.mxu0 0
        %834 = vmatprep.subr.bf16.mxu0 0
        %835 = vmatpush1.bf16.xpose.msra.mxu0 0
        %836 = vmatprep.subr.bf16.mxu0 0
        %837 = vmatpush1.bf16.xpose.msra.mxu0 0
        %838 = vmatprep.subr.bf16.mxu0 0
        %839 = vmatpush1.bf16.xpose.msra.mxu0 %v822
        %840 = vmatprep.subr.bf16.mxu0 0
        %841 = vmatpush2.bf16.xpose.msra.mxu0 0
        %842 = vmatprep.subr.bf16.mxu0 0
        %843 = vmatpush2.bf16.xpose.msra.mxu0 0
        %844 = vmatprep.subr.bf16.mxu0 0
        %845 = vmatpush2.bf16.xpose.msra.mxu0 0
        %846 = vmatprep.subr.bf16.mxu0 0
        %847 = vmatpush2.bf16.xpose.msra.mxu0 0
        %848 = vmatprep.subr.bf16.mxu0 0
        %849 = vmatpush2.bf16.xpose.msra.mxu0 0
        %850 = vmatprep.subr.bf16.mxu0 0
        %851 = vmatpush2.bf16.xpose.msra.mxu0 0
        %852 = vmatprep.subr.bf16.mxu0 0
        %853 = vmatpush2.bf16.xpose.msra.mxu0 0
        %854 = vmatprep.subr.bf16.mxu0 0
        %855 = vmatpush2.bf16.xpose.msra.mxu0 0
        %856 = vmatprep.mubr.bf16.mxu0 0
        %857 = vmatmul.mubr.bf16.gmra.mxu0 %v819
        %v858 = vpop.f32.mrf.mxu0
        %v859 = vadd.f32 0.0, %v858
        %v860 = vpop.f32.mrf.mxu0
        %v861 = vpop.f32.mrf.mxu0
        %v862 = vpop.f32.mrf.mxu0
        %863 = vdwg.mxu0
        %v864 = vmul.f32 %v859, 0.35355338
        %v865 = vsel %vm817, %v864, -inf
        %866 = vmax.xlane.f32.xlu0 %v865
        %v867 = vpop.xlane.xlu0 %866
        %v868 = vsub.f32 %v864, %v867
        %v869 = vmul.f32 %v868, 1.442695
        %v870 = vpow.pop %v869
        %v871 = vsel %vm817, %v870, 0.0
        %872 = vadd.xlane.f32.xlu0 %v871
        %v873 = vpop.xlane.xlu0 %872
        %v874 = vrcp.pop %v873
        %v875 = vmul.f32 %v870, %v874
        %876 = vst.msk [vmem:[%s610] sm:$0xff] %vm817, %v875
        %v877 = vpack.c.bf16 %v875, %v875
        %v879 = vsel %vm817, %v877, 0
        %vm881 = vcmask 1043456
        %v883 = vsel %vm881, %v816, 0
        %885 = vmatprep.subr.bf16.mxu0 0
        %886 = vmatpush1.bf16.msra.mxu0 0
        %887 = vmatprep.subr.bf16.mxu0 0
        %888 = vmatpush1.bf16.msra.mxu0 0
        %889 = vmatprep.subr.bf16.mxu0 0
        %890 = vmatpush1.bf16.msra.mxu0 0
        %891 = vmatprep.subr.bf16.mxu0 0
        %892 = vmatpush1.bf16.msra.mxu0 0
        %893 = vmatprep.subr.bf16.mxu0 0
        %894 = vmatpush1.bf16.msra.mxu0 0
        %895 = vmatprep.subr.bf16.mxu0 0
        %896 = vmatpush1.bf16.msra.mxu0 0
        %897 = vmatprep.subr.bf16.mxu0 0
        %898 = vmatpush1.bf16.msra.mxu0 0
        %899 = vmatprep.subr.bf16.mxu0 0
        %900 = vmatpush1.bf16.msra.mxu0 %v883
        %901 = vmatprep.subr.bf16.mxu0 0
        %902 = vmatpush2.bf16.msra.mxu0 0
        %903 = vmatprep.subr.bf16.mxu0 0
        %904 = vmatpush2.bf16.msra.mxu0 0
        %905 = vmatprep.subr.bf16.mxu0 0
        %906 = vmatpush2.bf16.msra.mxu0 0
        %907 = vmatprep.subr.bf16.mxu0 0
        %908 = vmatpush2.bf16.msra.mxu0 0
        %909 = vmatprep.subr.bf16.mxu0 0
        %910 = vmatpush2.bf16.msra.mxu0 0
        %911 = vmatprep.subr.bf16.mxu0 0
        %912 = vmatpush2.bf16.msra.mxu0 0
        %913 = vmatprep.subr.bf16.mxu0 0
        %914 = vmatpush2.bf16.msra.mxu0 0
        %915 = vmatprep.subr.bf16.mxu0 0
        %916 = vmatpush2.bf16.msra.mxu0 0
        %917 = vmatprep.mubr.bf16.mxu0 0
        %918 = vmatmul.mubr.bf16.gmra.mxu0 %v879
        %v919 = vpop.f32.mrf.mxu0
        %v920 = vadd.f32 0.0, %v919
        %v921 = vpop.f32.mrf.mxu0
        %v922 = vpop.f32.mrf.mxu0
        %v923 = vpop.f32.mrf.mxu0
        %924 = vdwg.mxu0
        %v925 = vpack.c.bf16 %v920, %v920
        %927 = vrot.lane.b32.xlu0 %v682, 120
        %v928 = vpop.permute.xlu0 %927
        %930 = vrot.lane.b32.xlu0 %v749, 120
        %v931 = vpop.permute.xlu0 %930
        %v933 = vsel %vm817, %v928, 0
        %v936 = vsel %vm817, %v931, 0
        %938 = vmatprep.subr.bf16.mxu0 0
        %939 = vmatpush1.bf16.xpose.msra.mxu0 0
        %940 = vmatprep.subr.bf16.mxu0 0
        %941 = vmatpush1.bf16.xpose.msra.mxu0 0
        %942 = vmatprep.subr.bf16.mxu0 0
        %943 = vmatpush1.bf16.xpose.msra.mxu0 0
        %944 = vmatprep.subr.bf16.mxu0 0
        %945 = vmatpush1.bf16.xpose.msra.mxu0 0
        %946 = vmatprep.subr.bf16.mxu0 0
        %947 = vmatpush1.bf16.xpose.msra.mxu0 0
        %948 = vmatprep.subr.bf16.mxu0 0
        %949 = vmatpush1.bf16.xpose.msra.mxu0 0
        %950 = vmatprep.subr.bf16.mxu0 0
        %951 = vmatpush1.bf16.xpose.msra.mxu0 0
        %952 = vmatprep.subr.bf16.mxu0 0
        %953 = vmatpush1.bf16.xpose.msra.mxu0 %v936
        %954 = vmatprep.subr.bf16.mxu0 0
        %955 = vmatpush2.bf16.xpose.msra.mxu0 0
        %956 = vmatprep.subr.bf16.mxu0 0
        %957 = vmatpush2.bf16.xpose.msra.mxu0 0
        %958 = vmatprep.subr.bf16.mxu0 0
        %959 = vmatpush2.bf16.xpose.msra.mxu0 0
        %960 = vmatprep.subr.bf16.mxu0 0
        %961 = vmatpush2.bf16.xpose.msra.mxu0 0
        %962 = vmatprep.subr.bf16.mxu0 0
        %963 = vmatpush2.bf16.xpose.msra.mxu0 0
        %964 = vmatprep.subr.bf16.mxu0 0
        %965 = vmatpush2.bf16.xpose.msra.mxu0 0
        %966 = vmatprep.subr.bf16.mxu0 0
        %967 = vmatpush2.bf16.xpose.msra.mxu0 0
        %968 = vmatprep.subr.bf16.mxu0 0
        %969 = vmatpush2.bf16.xpose.msra.mxu0 0
        %970 = vmatprep.mubr.bf16.mxu0 0
        %971 = vmatmul.mubr.bf16.gmra.mxu0 %v933
        %v972 = vpop.f32.mrf.mxu0
        %v973 = vadd.f32 0.0, %v972
        %v974 = vpop.f32.mrf.mxu0
        %v975 = vpop.f32.mrf.mxu0
        %v976 = vpop.f32.mrf.mxu0
        %977 = vdwg.mxu0
        %v978 = vmul.f32 %v973, 0.35355338
        %v979 = vsel %vm817, %v978, -inf
        %980 = vmax.xlane.f32.xlu0 %v979
        %v981 = vpop.xlane.xlu0 %980
        %v982 = vsub.f32 %v978, %v981
        %v983 = vmul.f32 %v982, 1.442695
        %v984 = vpow.pop %v983
        %v985 = vsel %vm817, %v984, 0.0
        %986 = vadd.xlane.f32.xlu0 %v985
        %v987 = vpop.xlane.xlu0 %986
        %v988 = vrcp.pop %v987
        %v989 = vmul.f32 %v984, %v988
        %s990 = scalar_lea.vmem %s610, 8 [#allocation18]
        %991 = vst.msk [vmem:[%s990] sm:$0xff] %vm817, %v989
        %v992 = vpack.c.bf16 %v989, %v989
        %994 = vrot.lane.b32.xlu0 %v816, 120
        %v995 = vpop.permute.xlu0 %994
        %v997 = vsel %vm817, %v992, 0
        %v1000 = vsel %vm881, %v995, 0
        %1002 = vmatprep.subr.bf16.mxu0 0
        %1003 = vmatpush1.bf16.msra.mxu0 0
        %1004 = vmatprep.subr.bf16.mxu0 0
        %1005 = vmatpush1.bf16.msra.mxu0 0
        %1006 = vmatprep.subr.bf16.mxu0 0
        %1007 = vmatpush1.bf16.msra.mxu0 0
        %1008 = vmatprep.subr.bf16.mxu0 0
        %1009 = vmatpush1.bf16.msra.mxu0 0
        %1010 = vmatprep.subr.bf16.mxu0 0
        %1011 = vmatpush1.bf16.msra.mxu0 0
        %1012 = vmatprep.subr.bf16.mxu0 0
        %1013 = vmatpush1.bf16.msra.mxu0 0
        %1014 = vmatprep.subr.bf16.mxu0 0
        %1015 = vmatpush1.bf16.msra.mxu0 0
        %1016 = vmatprep.subr.bf16.mxu0 0
        %1017 = vmatpush1.bf16.msra.mxu0 %v1000
        %1018 = vmatprep.subr.bf16.mxu0 0
        %1019 = vmatpush2.bf16.msra.mxu0 0
        %1020 = vmatprep.subr.bf16.mxu0 0
        %1021 = vmatpush2.bf16.msra.mxu0 0
        %1022 = vmatprep.subr.bf16.mxu0 0
        %1023 = vmatpush2.bf16.msra.mxu0 0
        %1024 = vmatprep.subr.bf16.mxu0 0
        %1025 = vmatpush2.bf16.msra.mxu0 0
        %1026 = vmatprep.subr.bf16.mxu0 0
        %1027 = vmatpush2.bf16.msra.mxu0 0
        %1028 = vmatprep.subr.bf16.mxu0 0
        %1029 = vmatpush2.bf16.msra.mxu0 0
        %1030 = vmatprep.subr.bf16.mxu0 0
        %1031 = vmatpush2.bf16.msra.mxu0 0
        %1032 = vmatprep.subr.bf16.mxu0 0
        %1033 = vmatpush2.bf16.msra.mxu0 0
        %1034 = vmatprep.mubr.bf16.mxu0 0
        %1035 = vmatmul.mubr.bf16.gmra.mxu0 %v997
        %v1036 = vpop.f32.mrf.mxu0
        %v1037 = vadd.f32 0.0, %v1036
        %v1038 = vpop.f32.mrf.mxu0
        %v1039 = vpop.f32.mrf.mxu0
        %v1040 = vpop.f32.mrf.mxu0
        %1041 = vdwg.mxu0
        %v1042 = vpack.c.bf16 %v1037, %v1037
        %1043 = vrot.lane.b32.xlu0 %v682, 112
        %v1044 = vpop.permute.xlu0 %1043
        %1045 = vrot.lane.b32.xlu0 %v749, 112
        %v1046 = vpop.permute.xlu0 %1045
        %v1048 = vsel %vm817, %v1044, 0
        %v1051 = vsel %vm817, %v1046, 0
        %1053 = vmatprep.subr.bf16.mxu0 0
        %1054 = vmatpush1.bf16.xpose.msra.mxu0 0
        %1055 = vmatprep.subr.bf16.mxu0 0
        %1056 = vmatpush1.bf16.xpose.msra.mxu0 0
        %1057 = vmatprep.subr.bf16.mxu0 0
        %1058 = vmatpush1.bf16.xpose.msra.mxu0 0
        %1059 = vmatprep.subr.bf16.mxu0 0
        %1060 = vmatpush1.bf16.xpose.msra.mxu0 0
        %1061 = vmatprep.subr.bf16.mxu0 0
        %1062 = vmatpush1.bf16.xpose.msra.mxu0 0
        %1063 = vmatprep.subr.bf16.mxu0 0
        %1064 = vmatpush1.bf16.xpose.msra.mxu0 0
        %1065 = vmatprep.subr.bf16.mxu0 0
        %1066 = vmatpush1.bf16.xpose.msra.mxu0 0
        %1067 = vmatprep.subr.bf16.mxu0 0
        %1068 = vmatpush1.bf16.xpose.msra.mxu0 %v1051
        %1069 = vmatprep.subr.bf16.mxu0 0
        %1070 = vmatpush2.bf16.xpose.msra.mxu0 0
        %1071 = vmatprep.subr.bf16.mxu0 0
        %1072 = vmatpush2.bf16.xpose.msra.mxu0 0
        %1073 = vmatprep.subr.bf16.mxu0 0
        %1074 = vmatpush2.bf16.xpose.msra.mxu0 0
        %1075 = vmatprep.subr.bf16.mxu0 0
        %1076 = vmatpush2.bf16.xpose.msra.mxu0 0
        %1077 = vmatprep.subr.bf16.mxu0 0
        %1078 = vmatpush2.bf16.xpose.msra.mxu0 0
        %1079 = vmatprep.subr.bf16.mxu0 0
        %1080 = vmatpush2.bf16.xpose.msra.mxu0 0
        %1081 = vmatprep.subr.bf16.mxu0 0
        %1082 = vmatpush2.bf16.xpose.msra.mxu0 0
        %1083 = vmatprep.subr.bf16.mxu0 0
        %1084 = vmatpush2.bf16.xpose.msra.mxu0 0
        %1085 = vmatprep.mubr.bf16.mxu0 0
        %1086 = vmatmul.mubr.bf16.gmra.mxu0 %v1048
        %v1087 = vpop.f32.mrf.mxu0
        %v1088 = vadd.f32 0.0, %v1087
        %v1089 = vpop.f32.mrf.mxu0
        %v1090 = vpop.f32.mrf.mxu0
        %v1091 = vpop.f32.mrf.mxu0
        %1092 = vdwg.mxu0
        %v1093 = vmul.f32 %v1088, 0.35355338
        %v1094 = vsel %vm817, %v1093, -inf
        %1095 = vmax.xlane.f32.xlu0 %v1094
        %v1096 = vpop.xlane.xlu0 %1095
        %v1097 = vsub.f32 %v1093, %v1096
        %v1098 = vmul.f32 %v1097, 1.442695
        %v1099 = vpow.pop %v1098
        %v1100 = vsel %vm817, %v1099, 0.0
        %1101 = vadd.xlane.f32.xlu0 %v1100
        %v1102 = vpop.xlane.xlu0 %1101
        %v1103 = vrcp.pop %v1102
        %v1104 = vmul.f32 %v1099, %v1103
        %s1105 = scalar_lea.vmem %s610, 16 [#allocation18]
        %1106 = vst.msk [vmem:[%s1105] sm:$0xff] %vm817, %v1104
        %v1107 = vpack.c.bf16 %v1104, %v1104
        %1108 = vrot.lane.b32.xlu0 %v816, 112
        %v1109 = vpop.permute.xlu0 %1108
        %v1111 = vsel %vm817, %v1107, 0
        %v1114 = vsel %vm881, %v1109, 0
        %1116 = vmatprep.subr.bf16.mxu0 0
        %1117 = vmatpush1.bf16.msra.mxu0 0
        %1118 = vmatprep.subr.bf16.mxu0 0
        %1119 = vmatpush1.bf16.msra.mxu0 0
        %1120 = vmatprep.subr.bf16.mxu0 0
        %1121 = vmatpush1.bf16.msra.mxu0 0
        %1122 = vmatprep.subr.bf16.mxu0 0
        %1123 = vmatpush1.bf16.msra.mxu0 0
        %1124 = vmatprep.subr.bf16.mxu0 0
        %1125 = vmatpush1.bf16.msra.mxu0 0
        %1126 = vmatprep.subr.bf16.mxu0 0
        %1127 = vmatpush1.bf16.msra.mxu0 0
        %1128 = vmatprep.subr.bf16.mxu0 0
        %1129 = vmatpush1.bf16.msra.mxu0 0
        %1130 = vmatprep.subr.bf16.mxu0 0
        %1131 = vmatpush1.bf16.msra.mxu0 %v1114
        %1132 = vmatprep.subr.bf16.mxu0 0
        %1133 = vmatpush2.bf16.msra.mxu0 0
        %1134 = vmatprep.subr.bf16.mxu0 0
        %1135 = vmatpush2.bf16.msra.mxu0 0
        %1136 = vmatprep.subr.bf16.mxu0 0
        %1137 = vmatpush2.bf16.msra.mxu0 0
        %1138 = vmatprep.subr.bf16.mxu0 0
        %1139 = vmatpush2.bf16.msra.mxu0 0
        %1140 = vmatprep.subr.bf16.mxu0 0
        %1141 = vmatpush2.bf16.msra.mxu0 0
        %1142 = vmatprep.subr.bf16.mxu0 0
        %1143 = vmatpush2.bf16.msra.mxu0 0
        %1144 = vmatprep.subr.bf16.mxu0 0
        %1145 = vmatpush2.bf16.msra.mxu0 0
        %1146 = vmatprep.subr.bf16.mxu0 0
        %1147 = vmatpush2.bf16.msra.mxu0 0
        %1148 = vmatprep.mubr.bf16.mxu0 0
        %1149 = vmatmul.mubr.bf16.gmra.mxu0 %v1111
        %v1150 = vpop.f32.mrf.mxu0
        %v1151 = vadd.f32 0.0, %v1150
        %v1152 = vpop.f32.mrf.mxu0
        %v1153 = vpop.f32.mrf.mxu0
        %v1154 = vpop.f32.mrf.mxu0
        %1155 = vdwg.mxu0
        %v1156 = vpack.c.bf16 %v1151, %v1151
        %1157 = vrot.lane.b32.xlu0 %v682, 104
        %v1158 = vpop.permute.xlu0 %1157
        %1159 = vrot.lane.b32.xlu0 %v749, 104
        %v1160 = vpop.permute.xlu0 %1159
        %v1162 = vsel %vm817, %v1158, 0
        %v1165 = vsel %vm817, %v1160, 0
        %1167 = vmatprep.subr.bf16.mxu0 0
        %1168 = vmatpush1.bf16.xpose.msra.mxu0 0
        %1169 = vmatprep.subr.bf16.mxu0 0
        %1170 = vmatpush1.bf16.xpose.msra.mxu0 0
        %1171 = vmatprep.subr.bf16.mxu0 0
        %1172 = vmatpush1.bf16.xpose.msra.mxu0 0
        %1173 = vmatprep.subr.bf16.mxu0 0
        %1174 = vmatpush1.bf16.xpose.msra.mxu0 0
        %1175 = vmatprep.subr.bf16.mxu0 0
        %1176 = vmatpush1.bf16.xpose.msra.mxu0 0
        %1177 = vmatprep.subr.bf16.mxu0 0
        %1178 = vmatpush1.bf16.xpose.msra.mxu0 0
        %1179 = vmatprep.subr.bf16.mxu0 0
        %1180 = vmatpush1.bf16.xpose.msra.mxu0 0
        %1181 = vmatprep.subr.bf16.mxu0 0
        %1182 = vmatpush1.bf16.xpose.msra.mxu0 %v1165
        %1183 = vmatprep.subr.bf16.mxu0 0
        %1184 = vmatpush2.bf16.xpose.msra.mxu0 0
        %1185 = vmatprep.subr.bf16.mxu0 0
        %1186 = vmatpush2.bf16.xpose.msra.mxu0 0
        %1187 = vmatprep.subr.bf16.mxu0 0
        %1188 = vmatpush2.bf16.xpose.msra.mxu0 0
        %1189 = vmatprep.subr.bf16.mxu0 0
        %1190 = vmatpush2.bf16.xpose.msra.mxu0 0
        %1191 = vmatprep.subr.bf16.mxu0 0
        %1192 = vmatpush2.bf16.xpose.msra.mxu0 0
        %1193 = vmatprep.subr.bf16.mxu0 0
        %1194 = vmatpush2.bf16.xpose.msra.mxu0 0
        %1195 = vmatprep.subr.bf16.mxu0 0
        %1196 = vmatpush2.bf16.xpose.msra.mxu0 0
        %1197 = vmatprep.subr.bf16.mxu0 0
        %1198 = vmatpush2.bf16.xpose.msra.mxu0 0
        %1199 = vmatprep.mubr.bf16.mxu0 0
        %1200 = vmatmul.mubr.bf16.gmra.mxu0 %v1162
        %v1201 = vpop.f32.mrf.mxu0
        %v1202 = vadd.f32 0.0, %v1201
        %v1203 = vpop.f32.mrf.mxu0
        %v1204 = vpop.f32.mrf.mxu0
        %v1205 = vpop.f32.mrf.mxu0
        %1206 = vdwg.mxu0
        %v1207 = vmul.f32 %v1202, 0.35355338
        %v1208 = vsel %vm817, %v1207, -inf
        %1209 = vmax.xlane.f32.xlu0 %v1208
        %v1210 = vpop.xlane.xlu0 %1209
        %v1211 = vsub.f32 %v1207, %v1210
        %v1212 = vmul.f32 %v1211, 1.442695
        %v1213 = vpow.pop %v1212
        %v1214 = vsel %vm817, %v1213, 0.0
        %1215 = vadd.xlane.f32.xlu0 %v1214
        %v1216 = vpop.xlane.xlu0 %1215
        %v1217 = vrcp.pop %v1216
        %v1218 = vmul.f32 %v1213, %v1217
        %s1219 = scalar_lea.vmem %s610, 24 [#allocation18]
        %1220 = vst.msk [vmem:[%s1219] sm:$0xff] %vm817, %v1218
        %v1221 = vpack.c.bf16 %v1218, %v1218
        %1222 = vrot.lane.b32.xlu0 %v816, 104
        %v1223 = vpop.permute.xlu0 %1222
        %v1225 = vsel %vm817, %v1221, 0
        %v1228 = vsel %vm881, %v1223, 0
        %1230 = vmatprep.subr.bf16.mxu0 0
        %1231 = vmatpush1.bf16.msra.mxu0 0
        %1232 = vmatprep.subr.bf16.mxu0 0
        %1233 = vmatpush1.bf16.msra.mxu0 0
        %1234 = vmatprep.subr.bf16.mxu0 0
        %1235 = vmatpush1.bf16.msra.mxu0 0
        %1236 = vmatprep.subr.bf16.mxu0 0
        %1237 = vmatpush1.bf16.msra.mxu0 0
        %1238 = vmatprep.subr.bf16.mxu0 0
        %1239 = vmatpush1.bf16.msra.mxu0 0
        %1240 = vmatprep.subr.bf16.mxu0 0
        %1241 = vmatpush1.bf16.msra.mxu0 0
        %1242 = vmatprep.subr.bf16.mxu0 0
        %1243 = vmatpush1.bf16.msra.mxu0 0
        %1244 = vmatprep.subr.bf16.mxu0 0
        %1245 = vmatpush1.bf16.msra.mxu0 %v1228
        %1246 = vmatprep.subr.bf16.mxu0 0
        %1247 = vmatpush2.bf16.msra.mxu0 0
        %1248 = vmatprep.subr.bf16.mxu0 0
        %1249 = vmatpush2.bf16.msra.mxu0 0
        %1250 = vmatprep.subr.bf16.mxu0 0
        %1251 = vmatpush2.bf16.msra.mxu0 0
        %1252 = vmatprep.subr.bf16.mxu0 0
        %1253 = vmatpush2.bf16.msra.mxu0 0
        %1254 = vmatprep.subr.bf16.mxu0 0
        %1255 = vmatpush2.bf16.msra.mxu0 0
        %1256 = vmatprep.subr.bf16.mxu0 0
        %1257 = vmatpush2.bf16.msra.mxu0 0
        %1258 = vmatprep.subr.bf16.mxu0 0
        %1259 = vmatpush2.bf16.msra.mxu0 0
        %1260 = vmatprep.subr.bf16.mxu0 0
        %1261 = vmatpush2.bf16.msra.mxu0 0
        %1262 = vmatprep.mubr.bf16.mxu0 0
        %1263 = vmatmul.mubr.bf16.gmra.mxu0 %v1225
        %v1264 = vpop.f32.mrf.mxu0
        %v1265 = vadd.f32 0.0, %v1264
        %v1266 = vpop.f32.mrf.mxu0
        %v1267 = vpop.f32.mrf.mxu0
        %v1268 = vpop.f32.mrf.mxu0
        %1269 = vdwg.mxu0
        %v1270 = vpack.c.bf16 %v1265, %v1265
        %1272 = vrot.lane.b32.xlu0 %v1042, 8
        %v1273 = vpop.permute.xlu0 %1272
        %1275 = vrot.lane.b32.xlu0 %v1156, 16
        %v1276 = vpop.permute.xlu0 %1275
        %1278 = vrot.lane.b32.xlu0 %v1270, 24
        %v1279 = vpop.permute.xlu0 %1278
        %v1282 = vsel %vm817, %v925, %v1273
        %vm1283 = vcmask 130048
        %v1285 = vsel %vm1283, %v1282, %v1276
        %vm1286 = vcmask 195584
        %v1288 = vsel %vm1286, %v1285, %v1279
        %v1289 = vld [vmem:[%s9] sm:$0xf]
        %v1290 = vld [vmem:[%s9 + $0x4] sm:$0xf]
        %v1291 = vld [vmem:[%s9 + $0x8] sm:$0xf]
        %v1292 = vld [vmem:[%s9 + $0xc] sm:$0xf]
        %v1293 = vld [vmem:[%s10] sm:$0x1]
        %v1295 = vlaneseq
        %v1296 = vshrl.u32 %v1295, 7
        %v1297 = vsub.s32 0, %v1296
        %v1298 = vrot.slane %v1293, %v1297
        %v1304 = vunpack.c.l.b16 %v1289
        %v1305 = vunpack.c.l.b16 %v1290
        %v1306 = vunpack.c.l.b16 %v1291
        %v1307 = vunpack.c.l.b16 %v1292
        %v1308 = vpack.c.b16 %v1305, %v1304
        %v1309 = vpack.c.b16 %v1307, %v1306
        %v1312 = vsel %vm638, %v1288, 0
        %1314 = vmatprep.subr.bf16.mxu0 0
        %1315 = vmatpush1.bf16.msra.mxu0 0
        %1316 = vmatprep.subr.bf16.mxu0 0
        %1317 = vmatpush1.bf16.msra.mxu0 0
        %1318 = vmatprep.subr.bf16.mxu0 0
        %1319 = vmatpush1.bf16.msra.mxu0 0
        %1320 = vmatprep.subr.bf16.mxu0 0
        %1321 = vmatpush1.bf16.msra.mxu0 0
        %1322 = vmatprep.subr.bf16.mxu0 0
        %1323 = vmatpush1.bf16.msra.mxu0 0
        %1324 = vmatprep.subr.bf16.mxu0 0
        %1325 = vmatpush1.bf16.msra.mxu0 0
        %1326 = vmatprep.subr.bf16.mxu0 0
        %1327 = vmatpush1.bf16.msra.mxu0 %v1309
        %1328 = vmatprep.subr.bf16.mxu0 0
        %1329 = vmatpush1.bf16.msra.mxu0 %v1308
        %1330 = vmatprep.subr.bf16.mxu0 0
        %1331 = vmatpush2.bf16.msra.mxu0 0
        %1332 = vmatprep.subr.bf16.mxu0 0
        %1333 = vmatpush2.bf16.msra.mxu0 0
        %1334 = vmatprep.subr.bf16.mxu0 0
        %1335 = vmatpush2.bf16.msra.mxu0 0
        %1336 = vmatprep.subr.bf16.mxu0 0
        %1337 = vmatpush2.bf16.msra.mxu0 0
        %1338 = vmatprep.subr.bf16.mxu0 0
        %1339 = vmatpush2.bf16.msra.mxu0 0
        %1340 = vmatprep.subr.bf16.mxu0 0
        %1341 = vmatpush2.bf16.msra.mxu0 0
        %1342 = vmatprep.subr.bf16.mxu0 0
        %1343 = vmatpush2.bf16.msra.mxu0 0
        %1344 = vmatprep.subr.bf16.mxu0 0
        %1345 = vmatpush2.bf16.msra.mxu0 0
        %1346 = vmatprep.mubr.bf16.mxu0 0
        %1347 = vmatmul.mubr.bf16.gmra.mxu0 %v1312
        %v1348 = vpop.f32.mrf.mxu0
        %v1349 = vadd.f32 %v1298, %v1348
        %v1350 = vpop.f32.mrf.mxu0
        %v1351 = vpop.f32.mrf.mxu0
        %v1352 = vpop.f32.mrf.mxu0
        %1353 = vdwg.mxu0
        %1354 = vst.msk [vmem:[%s603] sm:$0xff] %vm638, %v1349
        %s1355 = sand.u32 %s309, 1
        %s1356 = scalar_lea.sflag [#allocation4], %s1355
        %s1357 = sand.u32 %s309, 1
        %s1358 = smul.addr %s1357, 8
        %s1359 = scalar_lea.vmem [#allocation17], %s1358
        %s1360 = sand.u32 %s337, 1
        %s1361 = scalar_lea.sflag [#allocation19], %s1360
        %s1362 = sand.u32 %s337, 1
        %s1363 = smul.addr %s1362, 32
        %s1364 = scalar_lea.vmem [#allocation18], %s1363
        // Predicated region
        $region101: #{tpu_custom_call.1} parent=63 // pred_check
          %p1365 = pneg %p319
        $region102: #{tpu_custom_call.1} parent=63 // pred_check_branch
          %1367 = sbr.rel (%p1365) target = $region104
        $region103: #{tpu_custom_call.1} parent=63 // pred_region
          %s1369 = ssub.s32 128, 128
          %1370 = vsyncadd %s1356, %s1369
          %s1371 = sadd.s32 %s44, %s43
          %s1372 = smul.addr %s1371, 128
          %s1373 = scalar_lea.hbm %s11, %s1372
          %s1375 = sshll.u32 %s1359, 4
          %s1376 = int_to_ptr.vmem [resolvable:$true] %s1375
          %1378 = dma.vmem_to_hbm [thread:$0]  %s1376, 128, %s1373, %s1356
        $region104: #{tpu_custom_call.1} parent=63 // pred_fallthru
          _
        // Predicated region
        $region105: #{tpu_custom_call.1} parent=63 // pred_check
          %p1379 = pneg %p347
        $region106: #{tpu_custom_call.1} parent=63 // pred_check_branch
          %1381 = sbr.rel (%p1379) target = $region108
        $region107: #{tpu_custom_call.1} parent=63 // pred_region
          %s1383 = ssub.s32 512, 512
          %1384 = vsyncadd %s1361, %s1383
          %s1385 = smul.addr %s43, 4
          %s1386 = sadd.s32 %s44, %s1385
          %s1387 = smul.addr %s1386, 128
          %s1388 = scalar_lea.hbm %s12, %s1387
          %s1389 = sshll.u32 %s1364, 4
          %s1390 = int_to_ptr.vmem [resolvable:$true] %s1389
          %1395 = dma.vmem_to_hbm [thread:$0]  %s1390, 512, %s1388, %s1361, 128, 128, 8
        $region108: #{tpu_custom_call.1} parent=63 // pred_fallthru
          _
      $region64: #{tpu_custom_call.1} parent=5 // pred_fallthru
        _
      %p1396 = scmp.le.s32.totalorder 2, %s34
      // Predicated region
      $region109: #{tpu_custom_call.1} parent=5 // pred_check
        %p1397 = pneg %p1396
      $region110: #{tpu_custom_call.1} parent=5 // pred_check_branch
        %1399 = sbr.rel (%p1397) target = $region112
      $region111: #{tpu_custom_call.1} parent=5 // pred_region
        %s1400 = ssub.s32 %s34, 2
        // Predicated region
        $region113: #{tpu_custom_call.1} parent=111 // pred_check
          %p1401 = pneg %p325
        $region114: #{tpu_custom_call.1} parent=111 // pred_check_branch
          %1403 = sbr.rel (%p1401) target = $region116
        $region115: #{tpu_custom_call.1} parent=111 // pred_region
          %s1404 = sand.u32 %s310, 1
          %s1405 = scalar_lea.sflag [#allocation4], %s1404
          %s1406 = sand.u32 %s310, 1
          %s1407 = smul.addr %s1406, 8
          %s1408 = scalar_lea.vmem [#allocation17], %s1407
          %1409 = dma.done %s1405, 128
        $region116: #{tpu_custom_call.1} parent=111 // pred_fallthru
          _
        // Predicated region
        $region117: #{tpu_custom_call.1} parent=111 // pred_check
          %p1410 = pneg %p353
        $region118: #{tpu_custom_call.1} parent=111 // pred_check_branch
          %1412 = sbr.rel (%p1410) target = $region120
        $region119: #{tpu_custom_call.1} parent=111 // pred_region
          %s1413 = sand.u32 %s338, 1
          %s1414 = scalar_lea.sflag [#allocation19], %s1413
          %s1415 = sand.u32 %s338, 1
          %s1416 = smul.addr %s1415, 32
          %s1417 = scalar_lea.vmem [#allocation18], %s1416
          %1418 = dma.done %s1414, 512
        $region120: #{tpu_custom_call.1} parent=111 // pred_fallthru
          _
      $region112: #{tpu_custom_call.1} parent=5 // pred_fallthru
        _
    $region6: #{tpu_custom_call.1} parent=1 // loop_footer
      %s38 = sadd.s32 1, %s34
    $region7: #{tpu_custom_call.1} parent=1 // loop_footer_branch
      %33 = sbr.rel target = $region3
    $region8: #{tpu_custom_call.1} parent=1 // loop_exit
      _
    %1419 = vsyncpa [#allocation3], 1
    %s1420 = scalar_lea.sflag [#allocation3], 1
    %1421 = vsyncpa %s1420, 1
    %1422 = vsyncpa [#allocation6], 1
    %s1423 = scalar_lea.sflag [#allocation6], 1
    %1424 = vsyncpa %s1423, 1
    %1425 = vsyncpa [#allocation9], 1
    %1426 = vsyncpa [#allocation12], 1
    %1427 = vsyncpa [#allocation15], 1
    %1428 = vsyncpa [#allocation4], 1
    %s1429 = scalar_lea.sflag [#allocation4], 1
    %1430 = vsyncpa %s1429, 1
    %1431 = vsyncpa [#allocation19], 1
    %s1432 = scalar_lea.sflag [#allocation19], 1
    %1433 = vsyncpa %s1432, 1

</llo_original>
